<compile_context>
chip_gen: v7x
topology: tpu7x:2x2x1
jax: 0.10.0
libtpu: 0.0.40
codegen_flags: <defaults>
</compile_context>

<pallas_src>
import jax
import jax.numpy as jnp
import numpy as np
from jax.experimental import pallas as pl
from jax.experimental.pallas import tpu as pltpu


def _round_up(x, m):
    return ((x + m - 1) // m) * m


# ---------------------------------------------------------------------------
# Kernel 1: the sequential recurrence (attention + GRU), gridded over time.
# Per grid step it only produces h_new; projection/log-softmax happen later.
# ---------------------------------------------------------------------------
def recurrent_kernel(
    enc_ref,          # (Bp, S, H)   encoder outputs (resident)
    h0_ref,           # (Bp, H)      initial hidden state (resident)
    giw_ref,          # (1, Bp, 3H)  precomputed cur @ Wi_word + b_i (streamed)
    w1e_ref,          # (H, H)       attention.linear1, encoder half (resident)
    w1h_ref,          # (H, H)       attention.linear1, hidden half
    b1_ref,           # (1, H)
    w2_ref, b2_ref,   # (H, H), (1, H)  attention.linear2
    w3_ref, b3_ref,   # (H, H), (1, H)  attention.linear3
    wv_ref,           # (1, H)          attention.to_weight
    wic_ref,          # (H, 3H)  GRU input->hidden, context rows, gates r|z|n fused
    wh_ref,           # (H, 3H)  GRU hidden->hidden, r|z|n fused
    bh_ref,           # (1, 3H)
    hseq_ref,         # (1, Bp, H)   output block: this step's new hidden state
    h_sc,             # VMEM (Bp, H)    hidden-state carry across grid steps
    encp_sc,          # VMEM (Bp, S, H) hoisted encoder half of linear1
):
    t = pl.program_id(0)
    Bp, S, H = enc_ref.shape

    # ---- one-time init: hidden-state carry + hoisted encoder projection ----
    @pl.when(t == 0)
    def _init():
        h_sc[...] = h0_ref[...]
        enc_flat = enc_ref[...].reshape(Bp * S, H)
        encp_sc[...] = (
            jnp.dot(enc_flat, w1e_ref[...], preferred_element_type=jnp.float32)
            + b1_ref[...]
        ).reshape(Bp, S, H)

    h = h_sc[...]                                                      # (Bp, H)

    # ----- Attention(h, encoder_outputs) -----
    hid_proj = jnp.dot(h, w1h_ref[...], preferred_element_type=jnp.float32)
    # implicit broadcast add (no materialized (Bp*S, H) copy of hid_proj)
    x = jnp.tanh(encp_sc[...] + hid_proj[:, None, :])                  # (Bp, S, H)
    x = x.reshape(Bp * S, H)
    x = jnp.tanh(jnp.dot(x, w2_ref[...], preferred_element_type=jnp.float32)
                 + b2_ref[...])
    x = jnp.tanh(jnp.dot(x, w3_ref[...], preferred_element_type=jnp.float32)
                 + b3_ref[...])
    e = jnp.sum(x * wv_ref[...], axis=-1).reshape(Bp, S)               # (Bp, S)
    e_max = jnp.max(e, axis=-1, keepdims=True)
    p = jnp.exp(e - e_max)
    alpha = p * pl.reciprocal(jnp.sum(p, axis=-1, keepdims=True), approx=True)
    context = jnp.sum(alpha[:, :, None] * enc_ref[...], axis=1)        # (Bp, H)

    # ----- GRU cell (PyTorch gate order r|z|n, fused wide dots) -----
    gi = giw_ref[0] + jnp.dot(context, wic_ref[...],
                              preferred_element_type=jnp.float32)      # (Bp, 3H)
    gh = jnp.dot(h, wh_ref[...], preferred_element_type=jnp.float32) + bh_ref[...]
    r = jax.nn.sigmoid(gi[:, 0:H] + gh[:, 0:H])
    z = jax.nn.sigmoid(gi[:, H:2 * H] + gh[:, H:2 * H])
    n = jnp.tanh(gi[:, 2 * H:3 * H] + r * gh[:, 2 * H:3 * H])
    h_new = (1.0 - z) * n + z * h

    h_sc[...] = h_new
    hseq_ref[0] = h_new


# ---------------------------------------------------------------------------
# Kernel 2: batched output projection + log_softmax, gridded over time tiles
# ("parallel" -> both TensorCores on v7x), writing batch-major output.
# ---------------------------------------------------------------------------
def projection_kernel(h_ref, wout_ref, bout_ref, out_ref):
    # h_ref:   (TT, Bp, H)     hidden states for TT consecutive steps
    # wout:    (H, Vp), bout: (1, Vp) with -1e30 in padded vocab columns
    # out_ref: (Bp, TT, Vp)    batch-major log-probs for this time tile
    TT, Bp, H = h_ref.shape
    hm = h_ref[...].reshape(TT * Bp, H)
    logits = jnp.dot(hm, wout_ref[...],
                     preferred_element_type=jnp.float32) + bout_ref[...]
    m = jnp.max(logits, axis=-1, keepdims=True)
    lse = m + jnp.log(jnp.sum(jnp.exp(logits - m), axis=-1, keepdims=True))
    logp = logits - lse                                                # (TT*Bp, Vp)
    for i in range(TT):  # static unroll; each store is a lane-dense (Bp, Vp) slab
        out_ref[:, i, :] = logp[i * Bp:(i + 1) * Bp, :]


# ---------------------------------------------------------------------------
# Wrapper: equivalent of DecoderRNN.forward (teacher forcing, eval mode).
# ---------------------------------------------------------------------------
def decoder_rnn_forward(params, encoder_outputs, encoder_hidden, targets):
    B, S, H = encoder_outputs.shape
    _, T = targets.shape
    W = params["embed"].shape[1]
    V = params["wout_t"].shape[1]
    nsteps = T - 1
    if nsteps <= 0:  # guard: T == 1 -> empty decode
        return jnp.zeros((B, 0, V), jnp.float32), []

    B_pad = _round_up(B, 8)
    V_pad = _round_up(V, 128)
    TT = 8                              # time-tile for the projection pass
    ns_pad = _round_up(nsteps, TT)

    # ---- time-invariant preprocessing (runs once per call, XLA) ----
    targets_embed = jnp.take(params["embed"], targets, axis=0)         # (B, T, W)
    cur = jnp.transpose(targets_embed[:, :nsteps, :], (1, 0, 2))        # (T-1, B, W)
    cur = jnp.pad(cur, ((0, 0), (0, B_pad - B), (0, 0)))                # (T-1, Bp, W)
    enc = jnp.pad(encoder_outputs, ((0, B_pad - B), (0, 0), (0, 0)))    # (Bp, S, H)
    h0 = jnp.pad(encoder_hidden[0], ((0, B_pad - B), (0, 0)))           # (Bp, H)

    # attention.linear1 split into encoder / hidden halves (cat order [enc, hid])
    w1_enc = params["w1_t"][:H]                                         # (H, H)
    w1_hid = params["w1_t"][H:]                                         # (H, H)

    # GRU gates fused (r|z|n); input rows split into [word | context]
    wi = jnp.concatenate([params["wir_t"], params["wiz_t"], params["win_t"]], axis=1)
    wi_word, wi_ctx = wi[:W], wi[W:]                                    # (W,3H), (H,3H)
    bi = jnp.concatenate([params["bir"], params["biz"], params["bin"]], axis=1)
    wh = jnp.concatenate([params["whr_t"], params["whz_t"], params["whn_t"]], axis=1)
    bh = jnp.concatenate([params["bhr"], params["bhz"], params["bhn"]], axis=1)

    # Hoisted word half of the GRU input gates: one full-MXU-fill batched
    # matmul off the sequential critical path, streamed per step below.
    gi_word = jnp.einsum("tbw,wg->tbg", cur, wi_word) + bi              # (T-1, Bp, 3H)

    # ---------------- kernel 1: the recurrence ----------------
    operands1 = [
        enc, h0, gi_word,
        w1_enc, w1_hid, params["b1"],
        params["w2_t"], params["b2"], params["w3_t"], params["b3"], params["wv"],
        wi_ctx, wh, bh,
    ]

    def resident(arr):
        nd = arr.ndim
        return pl.BlockSpec(arr.shape, lambda t, _nd=nd: (0,) * _nd)

    in_specs1 = [
        resident(enc),
        resident(h0),
        pl.BlockSpec((1, B_pad, 3 * H), lambda t: (t, 0, 0)),           # streamed
    ] + [resident(a) for a in operands1[3:]]

    h_seq = pl.pallas_call(
        recurrent_kernel,
        out_shape=jax.ShapeDtypeStruct((nsteps, B_pad, H), jnp.float32),
        grid_spec=pltpu.PrefetchScalarGridSpec(
            num_scalar_prefetch=0,
            grid=(nsteps,),
            in_specs=in_specs1,
            out_specs=pl.BlockSpec((1, B_pad, H), lambda t: (t, 0, 0)),
            scratch_shapes=[
                pltpu.VMEM((B_pad, H), jnp.float32),        # hidden-state carry
                pltpu.VMEM((B_pad, S, H), jnp.float32),     # hoisted enc projection
            ],
        ),
        compiler_params=pltpu.CompilerParams(
            dimension_semantics=("arbitrary",)),             # true recurrence
    )(*operands1)

    # ---------------- kernel 2: projection + log_softmax ----------------
    h_seq_p = jnp.pad(h_seq, ((0, ns_pad - nsteps), (0, 0), (0, 0)))
    wout_p = jnp.pad(params["wout_t"], ((0, 0), (0, V_pad - V)))
    bout_p = jnp.pad(params["bout"], ((0, 0), (0, V_pad - V)), constant_values=-1e30)

    out = pl.pallas_call(
        projection_kernel,
        out_shape=jax.ShapeDtypeStruct((B_pad, ns_pad, V_pad), jnp.float32),
        grid_spec=pltpu.PrefetchScalarGridSpec(
            num_scalar_prefetch=0,
            grid=(ns_pad // TT,),
            in_specs=[
                pl.BlockSpec((TT, B_pad, H), lambda t: (t, 0, 0)),
                pl.BlockSpec((H, V_pad), lambda t: (0, 0)),
                pl.BlockSpec((1, V_pad), lambda t: (0, 0)),
            ],
            out_specs=pl.BlockSpec((B_pad, TT, V_pad), lambda t: (0, t, 0)),
        ),
        compiler_params=pltpu.CompilerParams(
            dimension_semantics=("parallel",)),              # independent time tiles
    )(h_seq_p, wout_p, bout_p)

    # Output already lands batch-major; just strip padding.
    seq_logprobs = out[:B, :nsteps, :V]                                  # (B, T-1, V)
    seq_preds = []                                                       # forward() returns empty list
    return seq_logprobs, seq_preds


# ---------------------------------------------------------------------------
# Pure-JAX reference (mirrors the PyTorch forward) for a numerical sanity check
# ---------------------------------------------------------------------------
def decoder_rnn_reference(params, encoder_outputs, encoder_hidden, targets):
    B, S, H = encoder_outputs.shape
    _, T = targets.shape
    h = encoder_hidden[0]
    te = jnp.take(params["embed"], targets, axis=0)
    outs = []
    for i in range(T - 1):
        hid = jnp.broadcast_to(h[:, None, :], (B, S, H))
        att_in = jnp.concatenate([encoder_outputs, hid], -1).reshape(B * S, 2 * H)
        x = jnp.tanh(att_in @ params["w1_t"] + params["b1"])
        x = jnp.tanh(x @ params["w2_t"] + params["b2"])
        x = jnp.tanh(x @ params["w3_t"] + params["b3"])
        e = jnp.sum(x * params["wv"], axis=-1).reshape(B, S)
        alpha = jax.nn.softmax(e, axis=1)
        context = jnp.sum(alpha[:, :, None] * encoder_outputs, axis=1)
        xcat = jnp.concatenate([te[:, i], context], axis=-1)
        r = jax.nn.sigmoid(xcat @ params["wir_t"] + params["bir"]
                           + h @ params["whr_t"] + params["bhr"])
        z = jax.nn.sigmoid(xcat @ params["wiz_t"] + params["biz"]
                           + h @ params["whz_t"] + params["bhz"])
        n = jnp.tanh(xcat @ params["win_t"] + params["bin"]
                     + r * (h @ params["whn_t"] + params["bhn"]))
        h = (1.0 - z) * n + z * h
        logits = h @ params["wout_t"] + params["bout"]
        outs.append(jax.nn.log_softmax(logits, axis=-1)[:, None, :])
    return jnp.concatenate(outs, axis=1)


# ---------------------------------------------------------------------------
# Deterministic parameter init (shapes as in DecoderRNN.__init__)
# ---------------------------------------------------------------------------
def make_params(key, vocab_size, embed_size, word_size):
    H, W, V = embed_size, word_size, vocab_size
    ks = jax.random.split(key, 16)

    def xavier(k, shape):
        fan_in, fan_out = shape[0], shape[1]
        std = np.sqrt(2.0 / (fan_in + fan_out))
        return (jax.random.normal(k, shape, jnp.float32) * std).astype(jnp.float32)

    def small(k, shape, scale=0.1):
        return (jax.random.normal(k, shape, jnp.float32) * scale).astype(jnp.float32)

    params = {
        "embed": small(ks[0], (V, W)),
        # attention (stored transposed: in_features x out_features)
        "w1_t": xavier(ks[1], (2 * H, H)), "b1": jnp.zeros((1, H), jnp.float32),
        "w2_t": xavier(ks[2], (H, H)),     "b2": jnp.zeros((1, H), jnp.float32),
        "w3_t": xavier(ks[3], (H, H)),     "b3": jnp.zeros((1, H), jnp.float32),
        "wv":   xavier(ks[4], (H, 1)).reshape(1, H),
        # GRU (PyTorch gate order r, z, n), stored transposed
        "wir_t": small(ks[5], (W + H, H)), "wiz_t": small(ks[6], (W + H, H)),
        "win_t": small(ks[7], (W + H, H)),
        "whr_t": small(ks[8], (H, H)), "whz_t": small(ks[9], (H, H)),
        "whn_t": small(ks[10], (H, H)),
        "bir": small(ks[11], (1, H)), "biz": small(ks[12], (1, H)),
        "bin": small(ks[13], (1, H)),
        "bhr": small(ks[14], (1, H)), "bhz": small(ks[15], (1, H)),
        "bhn": jnp.zeros((1, H), jnp.float32),
        # output projection
        "wout_t": xavier(jax.random.fold_in(key, 99), (H, V)),
        "bout": jnp.zeros((1, V), jnp.float32),
    }
    return params


if __name__ == "__main__":
    # Small shapes consistent with the module's forward.
    B, S, T = 2, 8, 6          # batch, encoder seq len, target length
    H = 32                      # embed_size (decoder hidden / attention dim)
    W = 32                      # word_size  (embedding dim)
    V = 64                      # vocab_size

    key = jax.random.PRNGKey(0)
    kp, ke, kh, kt = jax.random.split(key, 4)

    params = make_params(kp, V, H, W)
    encoder_outputs = jax.random.normal(ke, (B, S, H), jnp.float32)
    encoder_hidden = jax.random.normal(kh, (1, B, H), jnp.float32)
    targets = jax.random.randint(kt, (B, T), 0, V, dtype=jnp.int32)

    seq_logprobs, seq_preds = decoder_rnn_forward(
        params, encoder_outputs, encoder_hidden, targets)
    seq_logprobs = jax.block_until_ready(seq_logprobs)

    ref = jax.block_until_ready(
        decoder_rnn_reference(params, encoder_outputs, encoder_hidden, targets))

    assert seq_logprobs.shape == (B, T - 1, V), seq_logprobs.shape
    np.testing.assert_allclose(np.asarray(seq_logprobs), np.asarray(ref),
                               rtol=1e-2, atol=1e-2)
    print("KERNEL_OK")
</pallas_src>

<mosaic_0001>
module attributes {stable_mosaic.version = 11 : i64} {
  func.func @recurrent_kernel(%arg0: i32, %arg1: memref<8x8x32xf32, #tpu.memory_space<vmem>>, %arg2: memref<8x32xf32, #tpu.memory_space<vmem>>, %arg3: memref<1x8x96xf32, #tpu.memory_space<vmem>>, %arg4: memref<32x32xf32, #tpu.memory_space<vmem>>, %arg5: memref<32x32xf32, #tpu.memory_space<vmem>>, %arg6: memref<1x32xf32, #tpu.memory_space<vmem>>, %arg7: memref<32x32xf32, #tpu.memory_space<vmem>>, %arg8: memref<1x32xf32, #tpu.memory_space<vmem>>, %arg9: memref<32x32xf32, #tpu.memory_space<vmem>>, %arg10: memref<1x32xf32, #tpu.memory_space<vmem>>, %arg11: memref<1x32xf32, #tpu.memory_space<vmem>>, %arg12: memref<32x96xf32, #tpu.memory_space<vmem>>, %arg13: memref<32x96xf32, #tpu.memory_space<vmem>>, %arg14: memref<1x96xf32, #tpu.memory_space<vmem>>, %arg15: memref<1x8x32xf32, #tpu.memory_space<vmem>>, %arg16: memref<8x32xf32, #tpu.memory_space<vmem>>, %arg17: memref<8x8x32xf32, #tpu.memory_space<vmem>>) attributes {dimension_semantics = [#tpu.dimension_semantics<arbitrary>], iteration_bounds = array<i64: 5>, scalar_prefetch = 0 : i64, scratch_operands = 2 : i64, tpu.core_type = #tpu.core_type<tc>, window_params = [{pipeline_mode = #tpu.pipeline_mode<synchronous>, transform_indices = @transform_0, window_bounds = array<i64: 8, 8, 32>}, {pipeline_mode = #tpu.pipeline_mode<synchronous>, transform_indices = @transform_1, window_bounds = array<i64: 8, 32>}, {transform_indices = @transform_2, window_bounds = array<i64: 1, 8, 96>}, {pipeline_mode = #tpu.pipeline_mode<synchronous>, transform_indices = @transform_3, window_bounds = array<i64: 32, 32>}, {pipeline_mode = #tpu.pipeline_mode<synchronous>, transform_indices = @transform_4, window_bounds = array<i64: 32, 32>}, {pipeline_mode = #tpu.pipeline_mode<synchronous>, transform_indices = @transform_5, window_bounds = array<i64: 1, 32>}, {pipeline_mode = #tpu.pipeline_mode<synchronous>, transform_indices = @transform_6, window_bounds = array<i64: 32, 32>}, {pipeline_mode = #tpu.pipeline_mode<synchronous>, transform_indices = @transform_7, window_bounds = array<i64: 1, 32>}, {pipeline_mode = #tpu.pipeline_mode<synchronous>, transform_indices = @transform_8, window_bounds = array<i64: 32, 32>}, {pipeline_mode = #tpu.pipeline_mode<synchronous>, transform_indices = @transform_9, window_bounds = array<i64: 1, 32>}, {pipeline_mode = #tpu.pipeline_mode<synchronous>, transform_indices = @transform_10, window_bounds = array<i64: 1, 32>}, {pipeline_mode = #tpu.pipeline_mode<synchronous>, transform_indices = @transform_11, window_bounds = array<i64: 32, 96>}, {pipeline_mode = #tpu.pipeline_mode<synchronous>, transform_indices = @transform_12, window_bounds = array<i64: 32, 96>}, {pipeline_mode = #tpu.pipeline_mode<synchronous>, transform_indices = @transform_13, window_bounds = array<i64: 1, 96>}, {transform_indices = @transform_14, window_bounds = array<i64: 1, 8, 32>}]} {
    %c0_i32 = arith.constant 0 : i32
    %0 = arith.cmpi eq, %arg0, %c0_i32 : i32
    %1 = arith.extui %0 : i1 to i32
    %c0_i32_0 = arith.constant 0 : i32
    %2 = arith.cmpi ne, %1, %c0_i32_0 : i32
    scf.if %2 {
      %c0_45 = arith.constant 0 : index
      %c0_46 = arith.constant 0 : index
      %84 = vector.load %arg2[%c0_45, %c0_46] : memref<8x32xf32, #tpu.memory_space<vmem>>, vector<8x32xf32>
      %c0_47 = arith.constant 0 : index
      %c0_48 = arith.constant 0 : index
      %85 = vector.load %arg16[%c0_47, %c0_48] : memref<8x32xf32, #tpu.memory_space<vmem>>, vector<8x32xf32>
      tpu.vector_store %arg16[%c0_47, %c0_48], %84 {strides = array<i32>} : memref<8x32xf32, #tpu.memory_space<vmem>>, vector<8x32xf32>,
      %c0_49 = arith.constant 0 : index
      %c0_50 = arith.constant 0 : index
      %c0_51 = arith.constant 0 : index
      %86 = vector.load %arg1[%c0_49, %c0_50, %c0_51] : memref<8x8x32xf32, #tpu.memory_space<vmem>>, vector<8x8x32xf32>
      %87 = vector.shape_cast %86 : vector<8x8x32xf32> to vector<64x32xf32>
      %c0_52 = arith.constant 0 : index
      %c0_53 = arith.constant 0 : index
      %88 = vector.load %arg4[%c0_52, %c0_53] : memref<32x32xf32, #tpu.memory_space<vmem>>, vector<32x32xf32>
      %cst_54 = arith.constant dense<0.000000e+00> : vector<64x32xf32>
      %89 = tpu.matmul %87, %88, %cst_54 {dimension_numbers = #tpu.dot_dimension_numbers<[1], [0], [0], [1], [0, 0, 1, 1], [], []>} : vector<64x32xf32>, vector<32x32xf32>, vector<64x32xf32> -> vector<64x32xf32>
      %c0_55 = arith.constant 0 : index
      %c0_56 = arith.constant 0 : index
      %90 = vector.load %arg6[%c0_55, %c0_56] : memref<1x32xf32, #tpu.memory_space<vmem>>, vector<1x32xf32>
      %91 = vector.broadcast %90 : vector<1x32xf32> to vector<64x32xf32>
      %92 = arith.addf %89, %91 : vector<64x32xf32>
      %93 = vector.shape_cast %92 : vector<64x32xf32> to vector<8x8x32xf32>
      %c0_57 = arith.constant 0 : index
      %c0_58 = arith.constant 0 : index
      %c0_59 = arith.constant 0 : index
      %94 = vector.load %arg17[%c0_57, %c0_58, %c0_59] : memref<8x8x32xf32, #tpu.memory_space<vmem>>, vector<8x8x32xf32>
      tpu.vector_store %arg17[%c0_57, %c0_58, %c0_59], %93 {strides = array<i32>} : memref<8x8x32xf32, #tpu.memory_space<vmem>>, vector<8x8x32xf32>,
    } else {
    }
    %c0 = arith.constant 0 : index
    %c0_1 = arith.constant 0 : index
    %3 = vector.load %arg16[%c0, %c0_1] : memref<8x32xf32, #tpu.memory_space<vmem>>, vector<8x32xf32>
    %c0_2 = arith.constant 0 : index
    %c0_3 = arith.constant 0 : index
    %4 = vector.load %arg5[%c0_2, %c0_3] : memref<32x32xf32, #tpu.memory_space<vmem>>, vector<32x32xf32>
    %cst = arith.constant dense<0.000000e+00> : vector<8x32xf32>
    %5 = tpu.matmul %3, %4, %cst {dimension_numbers = #tpu.dot_dimension_numbers<[1], [0], [0], [1], [0, 0, 1, 1], [], []>} : vector<8x32xf32>, vector<32x32xf32>, vector<8x32xf32> -> vector<8x32xf32>
    %c0_4 = arith.constant 0 : index
    %c0_5 = arith.constant 0 : index
    %c0_6 = arith.constant 0 : index
    %6 = vector.load %arg17[%c0_4, %c0_5, %c0_6] : memref<8x8x32xf32, #tpu.memory_space<vmem>>, vector<8x8x32xf32>
    %7 = vector.shape_cast %5 : vector<8x32xf32> to vector<8x1x32xf32>
    %8 = vector.broadcast %7 : vector<8x1x32xf32> to vector<8x8x32xf32>
    %9 = arith.addf %6, %8 : vector<8x8x32xf32>
    %10 = math.tanh %9 : vector<8x8x32xf32>
    %11 = vector.shape_cast %10 : vector<8x8x32xf32> to vector<64x32xf32>
    %c0_7 = arith.constant 0 : index
    %c0_8 = arith.constant 0 : index
    %12 = vector.load %arg7[%c0_7, %c0_8] : memref<32x32xf32, #tpu.memory_space<vmem>>, vector<32x32xf32>
    %cst_9 = arith.constant dense<0.000000e+00> : vector<64x32xf32>
    %13 = tpu.matmul %11, %12, %cst_9 {dimension_numbers = #tpu.dot_dimension_numbers<[1], [0], [0], [1], [0, 0, 1, 1], [], []>} : vector<64x32xf32>, vector<32x32xf32>, vector<64x32xf32> -> vector<64x32xf32>
    %c0_10 = arith.constant 0 : index
    %c0_11 = arith.constant 0 : index
    %14 = vector.load %arg8[%c0_10, %c0_11] : memref<1x32xf32, #tpu.memory_space<vmem>>, vector<1x32xf32>
    %15 = vector.broadcast %14 : vector<1x32xf32> to vector<64x32xf32>
    %16 = arith.addf %13, %15 : vector<64x32xf32>
    %17 = math.tanh %16 : vector<64x32xf32>
    %c0_12 = arith.constant 0 : index
    %c0_13 = arith.constant 0 : index
    %18 = vector.load %arg9[%c0_12, %c0_13] : memref<32x32xf32, #tpu.memory_space<vmem>>, vector<32x32xf32>
    %cst_14 = arith.constant dense<0.000000e+00> : vector<64x32xf32>
    %19 = tpu.matmul %17, %18, %cst_14 {dimension_numbers = #tpu.dot_dimension_numbers<[1], [0], [0], [1], [0, 0, 1, 1], [], []>} : vector<64x32xf32>, vector<32x32xf32>, vector<64x32xf32> -> vector<64x32xf32>
    %c0_15 = arith.constant 0 : index
    %c0_16 = arith.constant 0 : index
    %20 = vector.load %arg10[%c0_15, %c0_16] : memref<1x32xf32, #tpu.memory_space<vmem>>, vector<1x32xf32>
    %21 = vector.broadcast %20 : vector<1x32xf32> to vector<64x32xf32>
    %22 = arith.addf %19, %21 : vector<64x32xf32>
    %23 = math.tanh %22 : vector<64x32xf32>
    %c0_17 = arith.constant 0 : index
    %c0_18 = arith.constant 0 : index
    %24 = vector.load %arg11[%c0_17, %c0_18] : memref<1x32xf32, #tpu.memory_space<vmem>>, vector<1x32xf32>
    %25 = vector.broadcast %24 : vector<1x32xf32> to vector<64x32xf32>
    %26 = arith.mulf %23, %25 : vector<64x32xf32>
    %cst_19 = arith.constant dense<0.000000e+00> : vector<64xf32>
    %27 = vector.multi_reduction <add>, %26, %cst_19 [1] : vector<64x32xf32> to vector<64xf32>
    %28 = vector.shape_cast %27 : vector<64xf32> to vector<8x8xf32>
    %cst_20 = arith.constant dense<0xFF800000> : vector<8xf32>
    %29 = vector.multi_reduction <maximumf>, %28, %cst_20 [1] : vector<8x8xf32> to vector<8xf32>
    %30 = vector.shape_cast %29 : vector<8xf32> to vector<8x1xf32>
    %31 = vector.broadcast %30 : vector<8x1xf32> to vector<8x8xf32>
    %32 = arith.subf %28, %31 : vector<8x8xf32>
    %33 = math.exp %32 : vector<8x8xf32>
    %cst_21 = arith.constant dense<0.000000e+00> : vector<8xf32>
    %34 = vector.multi_reduction <add>, %33, %cst_21 [1] : vector<8x8xf32> to vector<8xf32>
    %35 = vector.shape_cast %34 : vector<8xf32> to vector<8x1xf32>
    %36 = tpu.reciprocal %35 {approx = true} : vector<8x1xf32> -> vector<8x1xf32>
    %37 = vector.broadcast %36 : vector<8x1xf32> to vector<8x8xf32>
    %38 = arith.mulf %33, %37 : vector<8x8xf32>
    %39 = vector.shape_cast %38 : vector<8x8xf32> to vector<8x8x1xf32>
    %c0_22 = arith.constant 0 : index
    %c0_23 = arith.constant 0 : index
    %c0_24 = arith.constant 0 : index
    %40 = vector.load %arg1[%c0_22, %c0_23, %c0_24] : memref<8x8x32xf32, #tpu.memory_space<vmem>>, vector<8x8x32xf32>
    %41 = vector.broadcast %39 : vector<8x8x1xf32> to vector<8x8x32xf32>
    %42 = arith.mulf %41, %40 : vector<8x8x32xf32>
    %cst_25 = arith.constant dense<0.000000e+00> : vector<8x32xf32>
    %43 = vector.multi_reduction <add>, %42, %cst_25 [1] : vector<8x8x32xf32> to vector<8x32xf32>
    %c0_26 = arith.constant 0 : index
    %c0_27 = arith.constant 0 : index
    %c0_28 = arith.constant 0 : index
    %44 = vector.load %arg3[%c0_26, %c0_27, %c0_28] : memref<1x8x96xf32, #tpu.memory_space<vmem>>, vector<1x8x96xf32>
    %45 = vector.shape_cast %44 : vector<1x8x96xf32> to vector<8x96xf32>
    %c0_29 = arith.constant 0 : index
    %c0_30 = arith.constant 0 : index
    %46 = vector.load %arg12[%c0_29, %c0_30] : memref<32x96xf32, #tpu.memory_space<vmem>>, vector<32x96xf32>
    %cst_31 = arith.constant dense<0.000000e+00> : vector<8x96xf32>
    %47 = tpu.matmul %43, %46, %cst_31 {dimension_numbers = #tpu.dot_dimension_numbers<[1], [0], [0], [1], [0, 0, 1, 1], [], []>} : vector<8x32xf32>, vector<32x96xf32>, vector<8x96xf32> -> vector<8x96xf32>
    %48 = arith.addf %45, %47 : vector<8x96xf32>
    %c0_32 = arith.constant 0 : index
    %c0_33 = arith.constant 0 : index
    %49 = vector.load %arg13[%c0_32, %c0_33] : memref<32x96xf32, #tpu.memory_space<vmem>>, vector<32x96xf32>
    %cst_34 = arith.constant dense<0.000000e+00> : vector<8x96xf32>
    %50 = tpu.matmul %3, %49, %cst_34 {dimension_numbers = #tpu.dot_dimension_numbers<[1], [0], [0], [1], [0, 0, 1, 1], [], []>} : vector<8x32xf32>, vector<32x96xf32>, vector<8x96xf32> -> vector<8x96xf32>
    %c0_35 = arith.constant 0 : index
    %c0_36 = arith.constant 0 : index
    %51 = vector.load %arg14[%c0_35, %c0_36] : memref<1x96xf32, #tpu.memory_space<vmem>>, vector<1x96xf32>
    %52 = vector.broadcast %51 : vector<1x96xf32> to vector<8x96xf32>
    %53 = arith.addf %50, %52 : vector<8x96xf32>
    %54 = vector.extract_strided_slice %48 {offsets = [0, 0], sizes = [8, 32], strides = [1, 1]} : vector<8x96xf32> to vector<8x32xf32>
    %55 = vector.extract_strided_slice %53 {offsets = [0, 0], sizes = [8, 32], strides = [1, 1]} : vector<8x96xf32> to vector<8x32xf32>
    %56 = arith.addf %54, %55 : vector<8x32xf32>
    %57 = arith.negf %56 : vector<8x32xf32>
    %58 = math.exp %57 : vector<8x32xf32>
    %cst_37 = arith.constant 1.000000e+00 : f32
    %59 = vector.broadcast %cst_37 : f32 to vector<8x32xf32>
    %60 = arith.addf %59, %58 : vector<8x32xf32>
    %61 = arith.divf %59, %60 : vector<8x32xf32>
    %62 = vector.extract_strided_slice %48 {offsets = [0, 32], sizes = [8, 32], strides = [1, 1]} : vector<8x96xf32> to vector<8x32xf32>
    %63 = vector.extract_strided_slice %53 {offsets = [0, 32], sizes = [8, 32], strides = [1, 1]} : vector<8x96xf32> to vector<8x32xf32>
    %64 = arith.addf %62, %63 : vector<8x32xf32>
    %65 = arith.negf %64 : vector<8x32xf32>
    %66 = math.exp %65 : vector<8x32xf32>
    %cst_38 = arith.constant 1.000000e+00 : f32
    %67 = vector.broadcast %cst_38 : f32 to vector<8x32xf32>
    %68 = arith.addf %67, %66 : vector<8x32xf32>
    %69 = arith.divf %67, %68 : vector<8x32xf32>
    %70 = vector.extract_strided_slice %48 {offsets = [0, 64], sizes = [8, 32], strides = [1, 1]} : vector<8x96xf32> to vector<8x32xf32>
    %71 = vector.extract_strided_slice %53 {offsets = [0, 64], sizes = [8, 32], strides = [1, 1]} : vector<8x96xf32> to vector<8x32xf32>
    %72 = arith.mulf %61, %71 : vector<8x32xf32>
    %73 = arith.addf %70, %72 : vector<8x32xf32>
    %74 = math.tanh %73 : vector<8x32xf32>
    %cst_39 = arith.constant 1.000000e+00 : f32
    %75 = vector.broadcast %cst_39 : f32 to vector<8x32xf32>
    %76 = arith.subf %75, %69 : vector<8x32xf32>
    %77 = arith.mulf %76, %74 : vector<8x32xf32>
    %78 = arith.mulf %69, %3 : vector<8x32xf32>
    %79 = arith.addf %77, %78 : vector<8x32xf32>
    %c0_40 = arith.constant 0 : index
    %c0_41 = arith.constant 0 : index
    %80 = vector.load %arg16[%c0_40, %c0_41] : memref<8x32xf32, #tpu.memory_space<vmem>>, vector<8x32xf32>
    tpu.vector_store %arg16[%c0_40, %c0_41], %79 {strides = array<i32>} : memref<8x32xf32, #tpu.memory_space<vmem>>, vector<8x32xf32>,
    %c0_42 = arith.constant 0 : index
    %c0_43 = arith.constant 0 : index
    %c0_44 = arith.constant 0 : index
    %81 = vector.load %arg15[%c0_42, %c0_43, %c0_44] : memref<1x8x32xf32, #tpu.memory_space<vmem>>, vector<1x8x32xf32>
    %82 = vector.shape_cast %81 : vector<1x8x32xf32> to vector<8x32xf32>
    %83 = vector.shape_cast %79 : vector<8x32xf32> to vector<1x8x32xf32>
    tpu.vector_store %arg15[%c0_42, %c0_43, %c0_44], %83 {strides = array<i32>} : memref<1x8x32xf32, #tpu.memory_space<vmem>>, vector<1x8x32xf32>,
    return
  }
  func.func @transform_0(%arg0: i32) -> (i32, i32, i32) {
    %c0_i32 = arith.constant 0 : i32
    %c0_i32_0 = arith.constant 0 : i32
    %c0_i32_1 = arith.constant 0 : i32
    %c0_i32_2 = arith.constant 0 : i32
    return %c0_i32, %c0_i32_0, %c0_i32_1 : i32, i32, i32
  }
  func.func @transform_1(%arg0: i32) -> (i32, i32) {
    %c0_i32 = arith.constant 0 : i32
    %c0_i32_0 = arith.constant 0 : i32
    %c0_i32_1 = arith.constant 0 : i32
    return %c0_i32, %c0_i32_0 : i32, i32
  }
  func.func @transform_2(%arg0: i32) -> (i32, i32, i32) {
    %c0_i32 = arith.constant 0 : i32
    %c0_i32_0 = arith.constant 0 : i32
    %c0_i32_1 = arith.constant 0 : i32
    return %arg0, %c0_i32, %c0_i32_0 : i32, i32, i32
  }
  func.func @transform_3(%arg0: i32) -> (i32, i32) {
    %c0_i32 = arith.constant 0 : i32
    %c0_i32_0 = arith.constant 0 : i32
    %c0_i32_1 = arith.constant 0 : i32
    return %c0_i32, %c0_i32_0 : i32, i32
  }
  func.func @transform_4(%arg0: i32) -> (i32, i32) {
    %c0_i32 = arith.constant 0 : i32
    %c0_i32_0 = arith.constant 0 : i32
    %c0_i32_1 = arith.constant 0 : i32
    return %c0_i32, %c0_i32_0 : i32, i32
  }
  func.func @transform_5(%arg0: i32) -> (i32, i32) {
    %c0_i32 = arith.constant 0 : i32
    %c0_i32_0 = arith.constant 0 : i32
    %c0_i32_1 = arith.constant 0 : i32
    return %c0_i32, %c0_i32_0 : i32, i32
  }
  func.func @transform_6(%arg0: i32) -> (i32, i32) {
    %c0_i32 = arith.constant 0 : i32
    %c0_i32_0 = arith.constant 0 : i32
    %c0_i32_1 = arith.constant 0 : i32
    return %c0_i32, %c0_i32_0 : i32, i32
  }
  func.func @transform_7(%arg0: i32) -> (i32, i32) {
    %c0_i32 = arith.constant 0 : i32
    %c0_i32_0 = arith.constant 0 : i32
    %c0_i32_1 = arith.constant 0 : i32
    return %c0_i32, %c0_i32_0 : i32, i32
  }
  func.func @transform_8(%arg0: i32) -> (i32, i32) {
    %c0_i32 = arith.constant 0 : i32
    %c0_i32_0 = arith.constant 0 : i32
    %c0_i32_1 = arith.constant 0 : i32
    return %c0_i32, %c0_i32_0 : i32, i32
  }
  func.func @transform_9(%arg0: i32) -> (i32, i32) {
    %c0_i32 = arith.constant 0 : i32
    %c0_i32_0 = arith.constant 0 : i32
    %c0_i32_1 = arith.constant 0 : i32
    return %c0_i32, %c0_i32_0 : i32, i32
  }
  func.func @transform_10(%arg0: i32) -> (i32, i32) {
    %c0_i32 = arith.constant 0 : i32
    %c0_i32_0 = arith.constant 0 : i32
    %c0_i32_1 = arith.constant 0 : i32
    return %c0_i32, %c0_i32_0 : i32, i32
  }
  func.func @transform_11(%arg0: i32) -> (i32, i32) {
    %c0_i32 = arith.constant 0 : i32
    %c0_i32_0 = arith.constant 0 : i32
    %c0_i32_1 = arith.constant 0 : i32
    return %c0_i32, %c0_i32_0 : i32, i32
  }
  func.func @transform_12(%arg0: i32) -> (i32, i32) {
    %c0_i32 = arith.constant 0 : i32
    %c0_i32_0 = arith.constant 0 : i32
    %c0_i32_1 = arith.constant 0 : i32
    return %c0_i32, %c0_i32_0 : i32, i32
  }
  func.func @transform_13(%arg0: i32) -> (i32, i32) {
    %c0_i32 = arith.constant 0 : i32
    %c0_i32_0 = arith.constant 0 : i32
    %c0_i32_1 = arith.constant 0 : i32
    return %c0_i32, %c0_i32_0 : i32, i32
  }
  func.func @transform_14(%arg0: i32) -> (i32, i32, i32) {
    %c0_i32 = arith.constant 0 : i32
    %c0_i32_0 = arith.constant 0 : i32
    %c0_i32_1 = arith.constant 0 : i32
    return %arg0, %c0_i32, %c0_i32_0 : i32, i32, i32
  }
}

</mosaic_0001>

<llo_original>
// kernel: tpu_custom_call.1
$region0: #{tpu_custom_call.1}
  #allocation0 [shape = 'u32[]', space=smem, size = 0x4, offset = 0x4, fixed_abs, tag = 'smem constant byte address 0x4 - core index']
  #allocation1 [shape = 'u32[144,128]{1,0:T(1,128)}', space=vmem, size = 0x12000, scoped, tag = 'internal scratch']
  #allocation2 [shape = 'f32[8,32]{1,0:T(8,128)}', space=vmem, size = 0x1000, scoped, tag = 'scratch operand']
  #allocation3 [shape = 'f32[8,8,32]{2,1,0:T(8,128)}', space=vmem, size = 0x8000, scoped, tag = 'scratch operand']
  %s0 = inlined_call_operand.hbm [shape: f32[8,8,32], index: 0, kind: input, shape index: {}]
  %s1 = inlined_call_operand.hbm [shape: f32[8,32], index: 1, kind: input, shape index: {}]
  %s2 = inlined_call_operand.hbm [shape: f32[5,8,96], index: 2, kind: input, shape index: {}]
  %s3 = inlined_call_operand.hbm [shape: f32[32,32], index: 3, kind: input, shape index: {}]
  %s4 = inlined_call_operand.hbm [shape: f32[32,32], index: 4, kind: input, shape index: {}]
  %s5 = inlined_call_operand.vmem [shape: f32[1,32], index: 5, kind: input, shape index: {}]
  %s6 = inlined_call_operand.hbm [shape: f32[32,32], index: 6, kind: input, shape index: {}]
  %s7 = inlined_call_operand.vmem [shape: f32[1,32], index: 7, kind: input, shape index: {}]
  %s8 = inlined_call_operand.hbm [shape: f32[32,32], index: 8, kind: input, shape index: {}]
  %s9 = inlined_call_operand.vmem [shape: f32[1,32], index: 9, kind: input, shape index: {}]
  %s10 = inlined_call_operand.vmem [shape: f32[1,32], index: 10, kind: input, shape index: {}]
  %s11 = inlined_call_operand.vmem [shape: f32[32,96], index: 11, kind: input, shape index: {}]
  %s12 = inlined_call_operand.hbm [shape: f32[32,96], index: 12, kind: input, shape index: {}]
  %s13 = inlined_call_operand.vmem [shape: f32[1,96], index: 13, kind: input, shape index: {}]
  %s14 = inlined_call_operand.hbm [shape: f32[5,8,32], index: 14, kind: output, shape index: {}]
  %s15 = sld [smem:[#allocation0]]
  $region125: #{tpu_custom_call.1} parent=0
    _
  %s17 = ssub.s32 1, %s15
  %s18 = scalar_select 0, %s17, %s15
  $region1: #{tpu_custom_call.1} parent=0
    #allocation4 [shape = 'u8[32768]{0}', space=vmem, size = 0x8000, scoped, tag = 'input window, operand 0, single buffered']
    #allocation5 [shape = 's32[2]{0}', space=sflag, size = 0x8, scoped, tag = 'scoped memory for tpu_custom_call.1']
    #allocation6 [shape = 's32[2]{0}', space=sflag, size = 0x8, scoped, tag = 'scoped memory for tpu_custom_call.1']
    #allocation7 [shape = 'u8[4096]{0}', space=vmem, size = 0x1000, scoped, tag = 'input window, operand 1, single buffered']
    #allocation8 [shape = 's32[1]{0}', space=sflag, size = 0x4, scoped, tag = 'scoped memory for tpu_custom_call.1']
    #allocation9 [shape = 'u8[8192]{0}', space=vmem, size = 0x2000, scoped, tag = 'input window, operand 2']
    #allocation10 [shape = 'u8[16384]{0}', space=vmem, size = 0x4000, scoped, tag = 'input window, operand 3, single buffered']
    #allocation11 [shape = 'u8[16384]{0}', space=vmem, size = 0x4000, scoped, tag = 'input window, operand 4, single buffered']
    #allocation12 [shape = 's32[1]{0}', space=sflag, size = 0x4, scoped, tag = 'scoped memory for tpu_custom_call.1']
    #allocation13 [shape = 'u8[16384]{0}', space=vmem, size = 0x4000, scoped, tag = 'input window, operand 6, single buffered']
    #allocation14 [shape = 'u8[16384]{0}', space=vmem, size = 0x4000, scoped, tag = 'input window, operand 8, single buffered']
    #allocation15 [shape = 's32[1]{0}', space=sflag, size = 0x4, scoped, tag = 'scoped memory for tpu_custom_call.1']
    #allocation16 [shape = 'u8[16384]{0}', space=vmem, size = 0x4000, scoped, tag = 'input window, operand 12, single buffered']
    #allocation17 [shape = 'u8[8192]{0}', space=vmem, size = 0x2000, scoped, tag = 'output window, operand 0']
    %19 = vsyncpa [#allocation5], 0
    %20 = vsyncpa [#allocation8], 0
    %21 = vsyncpa [#allocation12], 0
    %22 = vsyncpa [#allocation15], 0
    %23 = vsyncpa [#allocation6], 0
    %s24 = scalar_lea.sflag [#allocation6], 1
    %25 = vsyncpa %s24, 0
    loop: start=0, step=1, limit=7
    $region2: #{tpu_custom_call.1} parent=1 // loop_pre_header
      _
    $region3: #{tpu_custom_call.1} parent=1 // loop_header
      %s27 = sphi 0, %s31
      %p28 = scmp.ge.s32.totalorder %s27, 7
      %s35 = sphi 0, %s35
      %s37 = sphi 0, %s35
      %s38 = sphi 0, %s37
      %s52 = sphi 0, %s38
      %s56 = sphi 0, %s56
      %s58 = sphi 0, %s56
      %s59 = sphi 0, %s58
      %s73 = sphi 0, %s59
      %s79 = sphi 0, %s81
      %s82 = sphi 0, %s79
      %s83 = sphi 0, %s82
      %s99 = sphi 0, %s83
      %s103 = sphi 0, %s103
      %s105 = sphi 0, %s103
      %s106 = sphi 0, %s105
      %s120 = sphi 0, %s106
      %s124 = sphi 0, %s124
      %s126 = sphi 0, %s124
      %s127 = sphi 0, %s126
      %s141 = sphi 0, %s127
      %s145 = sphi 0, %s145
      %s147 = sphi 0, %s145
      %s148 = sphi 0, %s147
      %s162 = sphi 0, %s148
      %s166 = sphi 0, %s166
      %s168 = sphi 0, %s166
      %s169 = sphi 0, %s168
      %s183 = sphi 0, %s169
      %s187 = sphi 0, %s187
      %s189 = sphi 0, %s187
      %s190 = sphi 0, %s189
      %s204 = sphi 0, %s190
      %s208 = sphi 0, %s208
      %s210 = sphi 0, %s208
      %s211 = sphi 0, %s210
      %s225 = sphi 0, %s211
      %s229 = sphi 0, %s229
      %s231 = sphi 0, %s229
      %s232 = sphi 0, %s231
      %s246 = sphi 0, %s232
      %s250 = sphi 0, %s250
      %s252 = sphi 0, %s250
      %s253 = sphi 0, %s252
      %s267 = sphi 0, %s253
      %s271 = sphi 0, %s271
      %s273 = sphi 0, %s271
      %s274 = sphi 0, %s273
      %s288 = sphi 0, %s274
      %s292 = sphi 0, %s292
      %s294 = sphi 0, %s292
      %s295 = sphi 0, %s294
      %s309 = sphi 0, %s295
      %s313 = sphi 0, %s313
      %s315 = sphi 0, %s313
      %s316 = sphi 0, %s315
      %s330 = sphi 0, %s316
      %s336 = sphi 0, %s338
      %s339 = sphi 0, %s336
      %s340 = sphi 0, %s339
      %s356 = sphi 0, %s340
    $region4: #{tpu_custom_call.1} parent=1 // loop_header_branch
      %30 = sbr.rel (%p28) target = $region8
    $region5: #{tpu_custom_call.1} parent=1 // loop_body
      %s32 = ssub.s32 %s27, 1
      %s33 = ssub.s32 %s27, 2
      %s34 = sadd.s32 %s27, 1
      %s36 = sadd.s32 %s35, 1
      %p39 = scmp.eq.s32.totalorder %s27, 4
      %p40 = scmp.ne.s32.totalorder %s35, %s37
      %p41 = scmp.eq.s32.totalorder %s27, 0
      %p42 = por %p40, %p41
      %p43 = scmp.ne.s32.totalorder %s35, %s37
      %p44 = scmp.eq.s32.totalorder %s32, 4
      %p45 = por %p43, %p44
      %p46 = scmp.ne.s32.totalorder %s37, %s38
      %p47 = scmp.eq.s32.totalorder %s32, 0
      %p48 = por %p46, %p47
      %p49 = scmp.ne.s32.totalorder %s37, %s38
      %p50 = scmp.eq.s32.totalorder %s33, 4
      %p51 = por %p49, %p50
      %p53 = scmp.ne.s32.totalorder %s38, %s52
      %p54 = scmp.eq.s32.totalorder %s33, 0
      %p55 = por %p53, %p54
      %s57 = sadd.s32 %s56, 1
      %p60 = scmp.eq.s32.totalorder %s27, 4
      %p61 = scmp.ne.s32.totalorder %s56, %s58
      %p62 = scmp.eq.s32.totalorder %s27, 0
      %p63 = por %p61, %p62
      %p64 = scmp.ne.s32.totalorder %s56, %s58
      %p65 = scmp.eq.s32.totalorder %s32, 4
      %p66 = por %p64, %p65
      %p67 = scmp.ne.s32.totalorder %s58, %s59
      %p68 = scmp.eq.s32.totalorder %s32, 0
      %p69 = por %p67, %p68
      %p70 = scmp.ne.s32.totalorder %s58, %s59
      %p71 = scmp.eq.s32.totalorder %s33, 4
      %p72 = por %p70, %p71
      %p74 = scmp.ne.s32.totalorder %s59, %s73
      %p75 = scmp.eq.s32.totalorder %s33, 0
      %p76 = por %p74, %p75
      %s77 = ssub.s32 %s27, %s34
      %p78 = scmp.eq.s32.totalorder %s77, 0
      %s80 = sadd.s32 %s79, 1
      %s81 = scalar_select %p78, %s79, %s80
      %p84 = pneg %p78
      %p85 = scmp.eq.s32.totalorder %s27, 4
      %p86 = por %p84, %p85
      %p87 = scmp.ne.s32.totalorder %s79, %s82
      %p88 = scmp.eq.s32.totalorder %s27, 0
      %p89 = por %p87, %p88
      %p90 = scmp.ne.s32.totalorder %s79, %s82
      %p91 = scmp.eq.s32.totalorder %s32, 4
      %p92 = por %p90, %p91
      %p93 = scmp.ne.s32.totalorder %s82, %s83
      %p94 = scmp.eq.s32.totalorder %s32, 0
      %p95 = por %p93, %p94
      %p96 = scmp.ne.s32.totalorder %s82, %s83
      %p97 = scmp.eq.s32.totalorder %s33, 4
      %p98 = por %p96, %p97
      %p100 = scmp.ne.s32.totalorder %s83, %s99
      %p101 = scmp.eq.s32.totalorder %s33, 0
      %p102 = por %p100, %p101
      %s104 = sadd.s32 %s103, 1
      %p107 = scmp.eq.s32.totalorder %s27, 4
      %p108 = scmp.ne.s32.totalorder %s103, %s105
      %p109 = scmp.eq.s32.totalorder %s27, 0
      %p110 = por %p108, %p109
      %p111 = scmp.ne.s32.totalorder %s103, %s105
      %p112 = scmp.eq.s32.totalorder %s32, 4
      %p113 = por %p111, %p112
      %p114 = scmp.ne.s32.totalorder %s105, %s106
      %p115 = scmp.eq.s32.totalorder %s32, 0
      %p116 = por %p114, %p115
      %p117 = scmp.ne.s32.totalorder %s105, %s106
      %p118 = scmp.eq.s32.totalorder %s33, 4
      %p119 = por %p117, %p118
      %p121 = scmp.ne.s32.totalorder %s106, %s120
      %p122 = scmp.eq.s32.totalorder %s33, 0
      %p123 = por %p121, %p122
      %s125 = sadd.s32 %s124, 1
      %p128 = scmp.eq.s32.totalorder %s27, 4
      %p129 = scmp.ne.s32.totalorder %s124, %s126
      %p130 = scmp.eq.s32.totalorder %s27, 0
      %p131 = por %p129, %p130
      %p132 = scmp.ne.s32.totalorder %s124, %s126
      %p133 = scmp.eq.s32.totalorder %s32, 4
      %p134 = por %p132, %p133
      %p135 = scmp.ne.s32.totalorder %s126, %s127
      %p136 = scmp.eq.s32.totalorder %s32, 0
      %p137 = por %p135, %p136
      %p138 = scmp.ne.s32.totalorder %s126, %s127
      %p139 = scmp.eq.s32.totalorder %s33, 4
      %p140 = por %p138, %p139
      %p142 = scmp.ne.s32.totalorder %s127, %s141
      %p143 = scmp.eq.s32.totalorder %s33, 0
      %p144 = por %p142, %p143
      %s146 = sadd.s32 %s145, 1
      %p149 = scmp.eq.s32.totalorder %s27, 4
      %p150 = scmp.ne.s32.totalorder %s145, %s147
      %p151 = scmp.eq.s32.totalorder %s27, 0
      %p152 = por %p150, %p151
      %p153 = scmp.ne.s32.totalorder %s145, %s147
      %p154 = scmp.eq.s32.totalorder %s32, 4
      %p155 = por %p153, %p154
      %p156 = scmp.ne.s32.totalorder %s147, %s148
      %p157 = scmp.eq.s32.totalorder %s32, 0
      %p158 = por %p156, %p157
      %p159 = scmp.ne.s32.totalorder %s147, %s148
      %p160 = scmp.eq.s32.totalorder %s33, 4
      %p161 = por %p159, %p160
      %p163 = scmp.ne.s32.totalorder %s148, %s162
      %p164 = scmp.eq.s32.totalorder %s33, 0
      %p165 = por %p163, %p164
      %s167 = sadd.s32 %s166, 1
      %p170 = scmp.eq.s32.totalorder %s27, 4
      %p171 = scmp.ne.s32.totalorder %s166, %s168
      %p172 = scmp.eq.s32.totalorder %s27, 0
      %p173 = por %p171, %p172
      %p174 = scmp.ne.s32.totalorder %s166, %s168
      %p175 = scmp.eq.s32.totalorder %s32, 4
      %p176 = por %p174, %p175
      %p177 = scmp.ne.s32.totalorder %s168, %s169
      %p178 = scmp.eq.s32.totalorder %s32, 0
      %p179 = por %p177, %p178
      %p180 = scmp.ne.s32.totalorder %s168, %s169
      %p181 = scmp.eq.s32.totalorder %s33, 4
      %p182 = por %p180, %p181
      %p184 = scmp.ne.s32.totalorder %s169, %s183
      %p185 = scmp.eq.s32.totalorder %s33, 0
      %p186 = por %p184, %p185
      %s188 = sadd.s32 %s187, 1
      %p191 = scmp.eq.s32.totalorder %s27, 4
      %p192 = scmp.ne.s32.totalorder %s187, %s189
      %p193 = scmp.eq.s32.totalorder %s27, 0
      %p194 = por %p192, %p193
      %p195 = scmp.ne.s32.totalorder %s187, %s189
      %p196 = scmp.eq.s32.totalorder %s32, 4
      %p197 = por %p195, %p196
      %p198 = scmp.ne.s32.totalorder %s189, %s190
      %p199 = scmp.eq.s32.totalorder %s32, 0
      %p200 = por %p198, %p199
      %p201 = scmp.ne.s32.totalorder %s189, %s190
      %p202 = scmp.eq.s32.totalorder %s33, 4
      %p203 = por %p201, %p202
      %p205 = scmp.ne.s32.totalorder %s190, %s204
      %p206 = scmp.eq.s32.totalorder %s33, 0
      %p207 = por %p205, %p206
      %s209 = sadd.s32 %s208, 1
      %p212 = scmp.eq.s32.totalorder %s27, 4
      %p213 = scmp.ne.s32.totalorder %s208, %s210
      %p214 = scmp.eq.s32.totalorder %s27, 0
      %p215 = por %p213, %p214
      %p216 = scmp.ne.s32.totalorder %s208, %s210
      %p217 = scmp.eq.s32.totalorder %s32, 4
      %p218 = por %p216, %p217
      %p219 = scmp.ne.s32.totalorder %s210, %s211
      %p220 = scmp.eq.s32.totalorder %s32, 0
      %p221 = por %p219, %p220
      %p222 = scmp.ne.s32.totalorder %s210, %s211
      %p223 = scmp.eq.s32.totalorder %s33, 4
      %p224 = por %p222, %p223
      %p226 = scmp.ne.s32.totalorder %s211, %s225
      %p227 = scmp.eq.s32.totalorder %s33, 0
      %p228 = por %p226, %p227
      %s230 = sadd.s32 %s229, 1
      %p233 = scmp.eq.s32.totalorder %s27, 4
      %p234 = scmp.ne.s32.totalorder %s229, %s231
      %p235 = scmp.eq.s32.totalorder %s27, 0
      %p236 = por %p234, %p235
      %p237 = scmp.ne.s32.totalorder %s229, %s231
      %p238 = scmp.eq.s32.totalorder %s32, 4
      %p239 = por %p237, %p238
      %p240 = scmp.ne.s32.totalorder %s231, %s232
      %p241 = scmp.eq.s32.totalorder %s32, 0
      %p242 = por %p240, %p241
      %p243 = scmp.ne.s32.totalorder %s231, %s232
      %p244 = scmp.eq.s32.totalorder %s33, 4
      %p245 = por %p243, %p244
      %p247 = scmp.ne.s32.totalorder %s232, %s246
      %p248 = scmp.eq.s32.totalorder %s33, 0
      %p249 = por %p247, %p248
      %s251 = sadd.s32 %s250, 1
      %p254 = scmp.eq.s32.totalorder %s27, 4
      %p255 = scmp.ne.s32.totalorder %s250, %s252
      %p256 = scmp.eq.s32.totalorder %s27, 0
      %p257 = por %p255, %p256
      %p258 = scmp.ne.s32.totalorder %s250, %s252
      %p259 = scmp.eq.s32.totalorder %s32, 4
      %p260 = por %p258, %p259
      %p261 = scmp.ne.s32.totalorder %s252, %s253
      %p262 = scmp.eq.s32.totalorder %s32, 0
      %p263 = por %p261, %p262
      %p264 = scmp.ne.s32.totalorder %s252, %s253
      %p265 = scmp.eq.s32.totalorder %s33, 4
      %p266 = por %p264, %p265
      %p268 = scmp.ne.s32.totalorder %s253, %s267
      %p269 = scmp.eq.s32.totalorder %s33, 0
      %p270 = por %p268, %p269
      %s272 = sadd.s32 %s271, 1
      %p275 = scmp.eq.s32.totalorder %s27, 4
      %p276 = scmp.ne.s32.totalorder %s271, %s273
      %p277 = scmp.eq.s32.totalorder %s27, 0
      %p278 = por %p276, %p277
      %p279 = scmp.ne.s32.totalorder %s271, %s273
      %p280 = scmp.eq.s32.totalorder %s32, 4
      %p281 = por %p279, %p280
      %p282 = scmp.ne.s32.totalorder %s273, %s274
      %p283 = scmp.eq.s32.totalorder %s32, 0
      %p284 = por %p282, %p283
      %p285 = scmp.ne.s32.totalorder %s273, %s274
      %p286 = scmp.eq.s32.totalorder %s33, 4
      %p287 = por %p285, %p286
      %p289 = scmp.ne.s32.totalorder %s274, %s288
      %p290 = scmp.eq.s32.totalorder %s33, 0
      %p291 = por %p289, %p290
      %s293 = sadd.s32 %s292, 1
      %p296 = scmp.eq.s32.totalorder %s27, 4
      %p297 = scmp.ne.s32.totalorder %s292, %s294
      %p298 = scmp.eq.s32.totalorder %s27, 0
      %p299 = por %p297, %p298
      %p300 = scmp.ne.s32.totalorder %s292, %s294
      %p301 = scmp.eq.s32.totalorder %s32, 4
      %p302 = por %p300, %p301
      %p303 = scmp.ne.s32.totalorder %s294, %s295
      %p304 = scmp.eq.s32.totalorder %s32, 0
      %p305 = por %p303, %p304
      %p306 = scmp.ne.s32.totalorder %s294, %s295
      %p307 = scmp.eq.s32.totalorder %s33, 4
      %p308 = por %p306, %p307
      %p310 = scmp.ne.s32.totalorder %s295, %s309
      %p311 = scmp.eq.s32.totalorder %s33, 0
      %p312 = por %p310, %p311
      %s314 = sadd.s32 %s313, 1
      %p317 = scmp.eq.s32.totalorder %s27, 4
      %p318 = scmp.ne.s32.totalorder %s313, %s315
      %p319 = scmp.eq.s32.totalorder %s27, 0
      %p320 = por %p318, %p319
      %p321 = scmp.ne.s32.totalorder %s313, %s315
      %p322 = scmp.eq.s32.totalorder %s32, 4
      %p323 = por %p321, %p322
      %p324 = scmp.ne.s32.totalorder %s315, %s316
      %p325 = scmp.eq.s32.totalorder %s32, 0
      %p326 = por %p324, %p325
      %p327 = scmp.ne.s32.totalorder %s315, %s316
      %p328 = scmp.eq.s32.totalorder %s33, 4
      %p329 = por %p327, %p328
      %p331 = scmp.ne.s32.totalorder %s316, %s330
      %p332 = scmp.eq.s32.totalorder %s33, 0
      %p333 = por %p331, %p332
      %s334 = ssub.s32 %s27, %s34
      %p335 = scmp.eq.s32.totalorder %s334, 0
      %s337 = sadd.s32 %s336, 1
      %s338 = scalar_select %p335, %s336, %s337
      %p341 = pneg %p335
      %p342 = scmp.eq.s32.totalorder %s27, 4
      %p343 = por %p341, %p342
      %p344 = scmp.ne.s32.totalorder %s336, %s339
      %p345 = scmp.eq.s32.totalorder %s27, 0
      %p346 = por %p344, %p345
      %p347 = scmp.ne.s32.totalorder %s336, %s339
      %p348 = scmp.eq.s32.totalorder %s32, 4
      %p349 = por %p347, %p348
      %p350 = scmp.ne.s32.totalorder %s339, %s340
      %p351 = scmp.eq.s32.totalorder %s32, 0
      %p352 = por %p350, %p351
      %p353 = scmp.ne.s32.totalorder %s339, %s340
      %p354 = scmp.eq.s32.totalorder %s33, 4
      %p355 = por %p353, %p354
      %p357 = scmp.ne.s32.totalorder %s340, %s356
      %p358 = scmp.eq.s32.totalorder %s33, 0
      %p359 = por %p357, %p358
      %p360 = scmp.le.s32.totalorder 1, %s27
      %p361 = scmp.lt.s32.totalorder %s27, 6
      %p362 = pnand %p360, %p361
      %p363 = pneg %p362
      // Predicated region
      $region9: #{tpu_custom_call.1} parent=5 // pred_check
        _
      $region10: #{tpu_custom_call.1} parent=5 // pred_check_branch
        %365 = sbr.rel (%p362) target = $region12
      $region11: #{tpu_custom_call.1} parent=5 // pred_region
        %s366 = ssub.s32 %s27, 1
        // Predicated region
        $region13: #{tpu_custom_call.1} parent=11 // pred_check
          %p367 = pneg %p48
        $region14: #{tpu_custom_call.1} parent=11 // pred_check_branch
          %369 = sbr.rel (%p367) target = $region16
        $region15: #{tpu_custom_call.1} parent=11 // pred_region
          %s371 = ssub.s32 1024, 1024
          %372 = vsyncadd [#allocation5], %s371
          %s373 = sshll.u32 [#allocation4], 4
          %s374 = int_to_ptr.vmem [resolvable:$true] %s373
          %379 = dma.hbm_to_vmem [thread:$0]  %s0, 1024, %s374, [#allocation5], 128, 128, 8
        $region16: #{tpu_custom_call.1} parent=11 // pred_fallthru
          _
        // Predicated region
        $region17: #{tpu_custom_call.1} parent=11 // pred_check
          %p380 = pneg %p69
        $region18: #{tpu_custom_call.1} parent=11 // pred_check_branch
          %382 = sbr.rel (%p380) target = $region20
        $region19: #{tpu_custom_call.1} parent=11 // pred_region
          %s384 = ssub.s32 128, 128
          %385 = vsyncadd [#allocation8], %s384
          %s387 = sshll.u32 [#allocation7], 4
          %s388 = int_to_ptr.vmem [resolvable:$true] %s387
          %390 = dma.hbm_to_vmem [thread:$0]  %s1, 128, %s388, [#allocation8]
        $region20: #{tpu_custom_call.1} parent=11 // pred_fallthru
          _
        // Predicated region
        $region21: #{tpu_custom_call.1} parent=11 // pred_check
          %p391 = pneg %p116
        $region22: #{tpu_custom_call.1} parent=11 // pred_check_branch
          %393 = sbr.rel (%p391) target = $region24
        $region23: #{tpu_custom_call.1} parent=11 // pred_region
          %s395 = ssub.s32 512, 512
          %396 = vsyncadd [#allocation8], %s395
          %s397 = sshll.u32 [#allocation10], 4
          %s398 = int_to_ptr.vmem [resolvable:$true] %s397
          %403 = dma.hbm_to_vmem [thread:$0]  %s3, 512, %s398, [#allocation8], 128, 128, 8
        $region24: #{tpu_custom_call.1} parent=11 // pred_fallthru
          _
        // Predicated region
        $region25: #{tpu_custom_call.1} parent=11 // pred_check
          %p404 = pneg %p137
        $region26: #{tpu_custom_call.1} parent=11 // pred_check_branch
          %406 = sbr.rel (%p404) target = $region28
        $region27: #{tpu_custom_call.1} parent=11 // pred_region
          %s408 = ssub.s32 512, 512
          %409 = vsyncadd [#allocation12], %s408
          %s410 = sshll.u32 [#allocation11], 4
          %s411 = int_to_ptr.vmem [resolvable:$true] %s410
          %416 = dma.hbm_to_vmem [thread:$0]  %s4, 512, %s411, [#allocation12], 128, 128, 8
        $region28: #{tpu_custom_call.1} parent=11 // pred_fallthru
          _
        // Predicated region
        $region29: #{tpu_custom_call.1} parent=11 // pred_check
          %p417 = pneg %p158
        $region30: #{tpu_custom_call.1} parent=11 // pred_check_branch
          %419 = sbr.rel (%p417) target = $region32
        $region31: #{tpu_custom_call.1} parent=11 // pred_region
          _
        $region32: #{tpu_custom_call.1} parent=11 // pred_fallthru
          _
        // Predicated region
        $region33: #{tpu_custom_call.1} parent=11 // pred_check
          %p420 = pneg %p179
        $region34: #{tpu_custom_call.1} parent=11 // pred_check_branch
          %422 = sbr.rel (%p420) target = $region36
        $region35: #{tpu_custom_call.1} parent=11 // pred_region
          %s424 = ssub.s32 512, 512
          %425 = vsyncadd [#allocation12], %s424
          %s426 = sshll.u32 [#allocation13], 4
          %s427 = int_to_ptr.vmem [resolvable:$true] %s426
          %432 = dma.hbm_to_vmem [thread:$0]  %s6, 512, %s427, [#allocation12], 128, 128, 8
        $region36: #{tpu_custom_call.1} parent=11 // pred_fallthru
          _
        // Predicated region
        $region37: #{tpu_custom_call.1} parent=11 // pred_check
          %p433 = pneg %p200
        $region38: #{tpu_custom_call.1} parent=11 // pred_check_branch
          %435 = sbr.rel (%p433) target = $region40
        $region39: #{tpu_custom_call.1} parent=11 // pred_region
          _
        $region40: #{tpu_custom_call.1} parent=11 // pred_fallthru
          _
        // Predicated region
        $region41: #{tpu_custom_call.1} parent=11 // pred_check
          %p436 = pneg %p221
        $region42: #{tpu_custom_call.1} parent=11 // pred_check_branch
          %438 = sbr.rel (%p436) target = $region44
        $region43: #{tpu_custom_call.1} parent=11 // pred_region
          %s440 = ssub.s32 512, 512
          %441 = vsyncadd [#allocation15], %s440
          %s442 = sshll.u32 [#allocation14], 4
          %s443 = int_to_ptr.vmem [resolvable:$true] %s442
          %448 = dma.hbm_to_vmem [thread:$0]  %s8, 512, %s443, [#allocation15], 128, 128, 8
        $region44: #{tpu_custom_call.1} parent=11 // pred_fallthru
          _
        // Predicated region
        $region45: #{tpu_custom_call.1} parent=11 // pred_check
          %p449 = pneg %p242
        $region46: #{tpu_custom_call.1} parent=11 // pred_check_branch
          %451 = sbr.rel (%p449) target = $region48
        $region47: #{tpu_custom_call.1} parent=11 // pred_region
          _
        $region48: #{tpu_custom_call.1} parent=11 // pred_fallthru
          _
        // Predicated region
        $region49: #{tpu_custom_call.1} parent=11 // pred_check
          %p452 = pneg %p263
        $region50: #{tpu_custom_call.1} parent=11 // pred_check_branch
          %454 = sbr.rel (%p452) target = $region52
        $region51: #{tpu_custom_call.1} parent=11 // pred_region
          _
        $region52: #{tpu_custom_call.1} parent=11 // pred_fallthru
          _
        // Predicated region
        $region53: #{tpu_custom_call.1} parent=11 // pred_check
          %p455 = pneg %p284
        $region54: #{tpu_custom_call.1} parent=11 // pred_check_branch
          %457 = sbr.rel (%p455) target = $region56
        $region55: #{tpu_custom_call.1} parent=11 // pred_region
          _
        $region56: #{tpu_custom_call.1} parent=11 // pred_fallthru
          _
        // Predicated region
        $region57: #{tpu_custom_call.1} parent=11 // pred_check
          %p458 = pneg %p305
        $region58: #{tpu_custom_call.1} parent=11 // pred_check_branch
          %460 = sbr.rel (%p458) target = $region60
        $region59: #{tpu_custom_call.1} parent=11 // pred_region
          %s462 = ssub.s32 512, 512
          %463 = vsyncadd [#allocation15], %s462
          %s464 = sshll.u32 [#allocation16], 4
          %s465 = int_to_ptr.vmem [resolvable:$true] %s464
          %470 = dma.hbm_to_vmem [thread:$0]  %s12, 512, %s465, [#allocation15], 128, 128, 8
        $region60: #{tpu_custom_call.1} parent=11 // pred_fallthru
          _
        // Predicated region
        $region61: #{tpu_custom_call.1} parent=11 // pred_check
          %p471 = pneg %p326
        $region62: #{tpu_custom_call.1} parent=11 // pred_check_branch
          %473 = sbr.rel (%p471) target = $region64
        $region63: #{tpu_custom_call.1} parent=11 // pred_region
          _
        $region64: #{tpu_custom_call.1} parent=11 // pred_fallthru
          _
      $region12: #{tpu_custom_call.1} parent=5 // pred_fallthru
        _
      %p474 = scmp.lt.s32.totalorder %s27, 5
      // Predicated region
      $region65: #{tpu_custom_call.1} parent=5 // pred_check
        %p475 = pneg %p474
      $region66: #{tpu_custom_call.1} parent=5 // pred_check_branch
        %477 = sbr.rel (%p475) target = $region68
      $region67: #{tpu_custom_call.1} parent=5 // pred_region
        // Predicated region
        $region69: #{tpu_custom_call.1} parent=67 // pred_check
          %p478 = pneg %p89
        $region70: #{tpu_custom_call.1} parent=67 // pred_check_branch
          %480 = sbr.rel (%p478) target = $region72
        $region71: #{tpu_custom_call.1} parent=67 // pred_region
          %s481 = sand.u32 %s27, 1
          %s482 = scalar_lea.sflag [#allocation5], %s481
          %s483 = sand.u32 %s79, 1
          %s484 = smul.addr %s483, 8
          %s485 = scalar_lea.vmem [#allocation9], %s484
          %s487 = ssub.s32 128, 128
          %488 = vsyncadd %s482, %s487
          %s489 = smul.addr %s27, 128
          %s490 = scalar_lea.hbm %s2, %s489
          %s492 = sshll.u32 %s485, 4
          %s493 = int_to_ptr.vmem [resolvable:$true] %s492
          %495 = dma.hbm_to_vmem [thread:$0]  %s490, 128, %s493, %s482
        $region72: #{tpu_custom_call.1} parent=67 // pred_fallthru
          _
      $region68: #{tpu_custom_call.1} parent=5 // pred_fallthru
        _
      %p496 = scmp.le.s32.totalorder 1, %s27
      %p497 = scmp.lt.s32.totalorder %s27, 6
      %p498 = pnand %p496, %p497
      %p499 = pneg %p498
      // Predicated region
      $region73: #{tpu_custom_call.1} parent=5 // pred_check
        _
      $region74: #{tpu_custom_call.1} parent=5 // pred_check_branch
        %501 = sbr.rel (%p498) target = $region76
      $region75: #{tpu_custom_call.1} parent=5 // pred_region
        %s502 = ssub.s32 %s27, 1
        // Predicated region
        $region77: #{tpu_custom_call.1} parent=75 // pred_check
          %p503 = pneg %p48
        $region78: #{tpu_custom_call.1} parent=75 // pred_check_branch
          %505 = sbr.rel (%p503) target = $region80
        $region79: #{tpu_custom_call.1} parent=75 // pred_region
          %506 = dma.done [#allocation5], 1024
        $region80: #{tpu_custom_call.1} parent=75 // pred_fallthru
          _
        // Predicated region
        $region81: #{tpu_custom_call.1} parent=75 // pred_check
          %p507 = pneg %p69
        $region82: #{tpu_custom_call.1} parent=75 // pred_check_branch
          %509 = sbr.rel (%p507) target = $region84
        $region83: #{tpu_custom_call.1} parent=75 // pred_region
          %510 = dma.done [#allocation8], 128
        $region84: #{tpu_custom_call.1} parent=75 // pred_fallthru
          _
        %s511 = sand.u32 %s32, 1
        %s512 = scalar_lea.sflag [#allocation5], %s511
        %s513 = sand.u32 %s82, 1
        %s514 = smul.addr %s513, 8
        %s515 = scalar_lea.vmem [#allocation9], %s514
        // Predicated region
        $region85: #{tpu_custom_call.1} parent=75 // pred_check
          %p516 = pneg %p95
        $region86: #{tpu_custom_call.1} parent=75 // pred_check_branch
          %518 = sbr.rel (%p516) target = $region88
        $region87: #{tpu_custom_call.1} parent=75 // pred_region
          %519 = dma.done %s512, 128
        $region88: #{tpu_custom_call.1} parent=75 // pred_fallthru
          _
        // Predicated region
        $region89: #{tpu_custom_call.1} parent=75 // pred_check
          %p520 = pneg %p116
        $region90: #{tpu_custom_call.1} parent=75 // pred_check_branch
          %522 = sbr.rel (%p520) target = $region92
        $region91: #{tpu_custom_call.1} parent=75 // pred_region
          %523 = dma.done [#allocation8], 512
        $region92: #{tpu_custom_call.1} parent=75 // pred_fallthru
          _
        // Predicated region
        $region93: #{tpu_custom_call.1} parent=75 // pred_check
          %p524 = pneg %p137
        $region94: #{tpu_custom_call.1} parent=75 // pred_check_branch
          %526 = sbr.rel (%p524) target = $region96
        $region95: #{tpu_custom_call.1} parent=75 // pred_region
          %527 = dma.done [#allocation12], 512
        $region96: #{tpu_custom_call.1} parent=75 // pred_fallthru
          _
        // Predicated region
        $region97: #{tpu_custom_call.1} parent=75 // pred_check
          %p528 = pneg %p179
        $region98: #{tpu_custom_call.1} parent=75 // pred_check_branch
          %530 = sbr.rel (%p528) target = $region100
        $region99: #{tpu_custom_call.1} parent=75 // pred_region
          %531 = dma.done [#allocation12], 512
        $region100: #{tpu_custom_call.1} parent=75 // pred_fallthru
          _
        // Predicated region
        $region101: #{tpu_custom_call.1} parent=75 // pred_check
          %p532 = pneg %p221
        $region102: #{tpu_custom_call.1} parent=75 // pred_check_branch
          %534 = sbr.rel (%p532) target = $region104
        $region103: #{tpu_custom_call.1} parent=75 // pred_region
          %535 = dma.done [#allocation15], 512
        $region104: #{tpu_custom_call.1} parent=75 // pred_fallthru
          _
        // Predicated region
        $region105: #{tpu_custom_call.1} parent=75 // pred_check
          %p536 = pneg %p305
        $region106: #{tpu_custom_call.1} parent=75 // pred_check_branch
          %538 = sbr.rel (%p536) target = $region108
        $region107: #{tpu_custom_call.1} parent=75 // pred_region
          %539 = dma.done [#allocation15], 512
        $region108: #{tpu_custom_call.1} parent=75 // pred_fallthru
          _
        %p540 = pneg %p48
        %p541 = pneg %p45
        %p542 = pneg %p69
        %p543 = pneg %p66
        %s544 = sand.u32 %s32, 1
        %s545 = scalar_lea.sflag [#allocation5], %s544
        %s546 = sand.u32 %s82, 1
        %s547 = smul.addr %s546, 8
        %s548 = scalar_lea.vmem [#allocation9], %s547
        %p549 = pneg %p95
        %p550 = pneg %p92
        %p551 = pneg %p116
        %p552 = pneg %p113
        %p553 = pneg %p137
        %p554 = pneg %p134
        %p555 = pneg %p158
        %p556 = pneg %p155
        %p557 = pneg %p179
        %p558 = pneg %p176
        %p559 = pneg %p200
        %p560 = pneg %p197
        %p561 = pneg %p221
        %p562 = pneg %p218
        %p563 = pneg %p242
        %p564 = pneg %p239
        %p565 = pneg %p263
        %p566 = pneg %p260
        %p567 = pneg %p284
        %p568 = pneg %p281
        %p569 = pneg %p305
        %p570 = pneg %p302
        %p571 = pneg %p326
        %p572 = pneg %p323
        %p573 = pneg %p352
        %p574 = pneg %p349
        %s575 = sand.u32 %s339, 1
        %s576 = scalar_lea.sflag [#allocation6], %s575
        %s577 = sand.u32 %s339, 1
        %s578 = smul.addr %s577, 8
        %s579 = scalar_lea.vmem [#allocation17], %s578
        %p580 = scmp.eq.s32.totalorder %s32, 0
        // Predicated region
        $region109: #{tpu_custom_call.1} parent=75 // pred_check
          %p581 = pneg %p580
        $region110: #{tpu_custom_call.1} parent=75 // pred_check_branch
          %583 = sbr.rel (%p581) target = $region112
        $region111: #{tpu_custom_call.1} parent=75 // pred_region
          %v584 = vld [vmem:[#allocation7] sm:$0xff]
          %vm585 = vcmask 261120
          %586 = vst.msk [vmem:[#allocation2] sm:$0xff] %vm585, %v584
          %v587 = vld [vmem:[#allocation4] sm:$0xff]
          %v588 = vld [vmem:[#allocation4 + $0x8] sm:$0xff]
          %v589 = vld [vmem:[#allocation4 + $0x10] sm:$0xff]
          %v590 = vld [vmem:[#allocation4 + $0x18] sm:$0xff]
          %v591 = vld [vmem:[#allocation4 + $0x20] sm:$0xff]
          %v592 = vld [vmem:[#allocation4 + $0x28] sm:$0xff]
          %v593 = vld [vmem:[#allocation4 + $0x30] sm:$0xff]
          %v594 = vld [vmem:[#allocation4 + $0x38] sm:$0xff]
          %v595 = vld [vmem:[#allocation10] sm:$0xff]
          %v596 = vld [vmem:[#allocation10 + $0x8] sm:$0xff]
          %v597 = vld [vmem:[#allocation10 + $0x10] sm:$0xff]
          %v598 = vld [vmem:[#allocation10 + $0x18] sm:$0xff]
          %v599 = vld [vmem:[%s5] sm:$0x1]
          %v601 = vlaneseq
          %v602 = vshrl.u32 %v601, 7
          %v603 = vsub.s32 0, %v602
          %v604 = vrot.slane %v599, %v603
          %v607 = vsel %vm585, %v587, 0
          %v610 = vsel %vm585, %v588, 0
          %v613 = vsel %vm585, %v589, 0
          %v616 = vsel %vm585, %v590, 0
          %v619 = vsel %vm585, %v591, 0
          %v622 = vsel %vm585, %v592, 0
          %v625 = vsel %vm585, %v593, 0
          %v628 = vsel %vm585, %v594, 0
          %630 = vmatprep.subr.mxu0 0.0
          %631 = vmatpush1.msra.mxu0 %v595
          %632 = vmatprep.subr.mxu0 0.0
          %633 = vmatpush1.msra.mxu0 %v596
          %634 = vmatprep.subr.mxu0 0.0
          %635 = vmatpush1.msra.mxu0 %v597
          %636 = vmatprep.subr.mxu0 0.0
          %637 = vmatpush1.msra.mxu0 %v598
          %638 = vmatprep.subr.mxu0 0.0
          %639 = vmatpush1.msra.mxu0 0.0
          %640 = vmatprep.subr.mxu0 0.0
          %641 = vmatpush1.msra.mxu0 0.0
          %642 = vmatprep.subr.mxu0 0.0
          %643 = vmatpush1.msra.mxu0 0.0
          %644 = vmatprep.subr.mxu0 0.0
          %645 = vmatpush1.msra.mxu0 0.0
          %646 = vmatprep.subr.mxu0 0.0
          %647 = vmatpush1.msra.mxu0 0.0
          %648 = vmatprep.subr.mxu0 0.0
          %649 = vmatpush1.msra.mxu0 0.0
          %650 = vmatprep.subr.mxu0 0.0
          %651 = vmatpush1.msra.mxu0 0.0
          %652 = vmatprep.subr.mxu0 0.0
          %653 = vmatpush1.msra.mxu0 0.0
          %654 = vmatprep.subr.mxu0 0.0
          %655 = vmatpush1.msra.mxu0 0.0
          %656 = vmatprep.subr.mxu0 0.0
          %657 = vmatpush1.msra.mxu0 0.0
          %658 = vmatprep.subr.mxu0 0.0
          %659 = vmatpush1.msra.mxu0 0.0
          %660 = vmatprep.subr.mxu0 0.0
          %661 = vmatpush1.msra.mxu0 0.0
          %662 = vmatprep.subr.mxu0 0.0
          %663 = vmatpush1.msra.mxu0 0.0
          %664 = vmatprep.subr.mxu0 0.0
          %665 = vmatpush1.msra.mxu0 0.0
          %666 = vmatprep.subr.mxu0 0.0
          %667 = vmatpush1.msra.mxu0 0.0
          %668 = vmatprep.subr.mxu0 0.0
          %669 = vmatpush1.msra.mxu0 0.0
          %670 = vmatprep.subr.mxu0 0.0
          %671 = vmatpush1.msra.mxu0 0.0
          %672 = vmatprep.subr.mxu0 0.0
          %673 = vmatpush1.msra.mxu0 0.0
          %674 = vmatprep.subr.mxu0 0.0
          %675 = vmatpush1.msra.mxu0 0.0
          %676 = vmatprep.subr.mxu0 0.0
          %677 = vmatpush1.msra.mxu0 0.0
          %678 = vmatprep.subr.mxu0 0.0
          %679 = vmatpush1.msra.mxu0 0.0
          %680 = vmatprep.subr.mxu0 0.0
          %681 = vmatpush1.msra.mxu0 0.0
          %682 = vmatprep.subr.mxu0 0.0
          %683 = vmatpush1.msra.mxu0 0.0
          %684 = vmatprep.subr.mxu0 0.0
          %685 = vmatpush1.msra.mxu0 0.0
          %686 = vmatprep.subr.mxu0 0.0
          %687 = vmatpush1.msra.mxu0 0.0
          %688 = vmatprep.subr.mxu0 0.0
          %689 = vmatpush1.msra.mxu0 0.0
          %690 = vmatprep.subr.mxu0 0.0
          %691 = vmatpush1.msra.mxu0 0.0
          %692 = vmatprep.subr.mxu0 0.0
          %693 = vmatpush1.msra.mxu0 0.0
          %694 = vmatprep.mubr.f32.mxu0 0.0
          %695 = vmatmul.mubr.f32.gmra.mrb[0].mxu0 %v607
          %v696 = vpop.f32.mrb[0].mxu0
          %v697 = vadd.f32 %v604, %v696
          %v698 = vpop.f32.mrb[0].mxu0
          %699 = vmatprep.mubr.f32.mxu0 0.0
          %700 = vmatmul.mubr.f32.gmra.mrb[0].mxu0 %v610
          %v701 = vpop.f32.mrb[0].mxu0
          %v702 = vadd.f32 %v604, %v701
          %v703 = vpop.f32.mrb[0].mxu0
          %704 = vmatprep.mubr.f32.mxu0 0.0
          %705 = vmatmul.mubr.f32.gmra.mrb[0].mxu0 %v613
          %v706 = vpop.f32.mrb[0].mxu0
          %v707 = vadd.f32 %v604, %v706
          %v708 = vpop.f32.mrb[0].mxu0
          %709 = vmatprep.mubr.f32.mxu0 0.0
          %710 = vmatmul.mubr.f32.gmra.mrb[0].mxu0 %v616
          %v711 = vpop.f32.mrb[0].mxu0
          %v712 = vadd.f32 %v604, %v711
          %v713 = vpop.f32.mrb[0].mxu0
          %714 = vmatprep.mubr.f32.mxu0 0.0
          %715 = vmatmul.mubr.f32.gmra.mrb[0].mxu0 %v619
          %v716 = vpop.f32.mrb[0].mxu0
          %v717 = vadd.f32 %v604, %v716
          %v718 = vpop.f32.mrb[0].mxu0
          %719 = vmatprep.mubr.f32.mxu0 0.0
          %720 = vmatmul.mubr.f32.gmra.mrb[0].mxu0 %v622
          %v721 = vpop.f32.mrb[0].mxu0
          %v722 = vadd.f32 %v604, %v721
          %v723 = vpop.f32.mrb[0].mxu0
          %724 = vmatprep.mubr.f32.mxu0 0.0
          %725 = vmatmul.mubr.f32.gmra.mrb[0].mxu0 %v625
          %v726 = vpop.f32.mrb[0].mxu0
          %v727 = vadd.f32 %v604, %v726
          %v728 = vpop.f32.mrb[0].mxu0
          %729 = vmatprep.mubr.f32.mxu0 0.0
          %730 = vmatmul.mubr.f32.gmra.mrb[0].mxu0 %v628
          %v731 = vpop.f32.mrb[0].mxu0
          %v732 = vadd.f32 %v604, %v731
          %v733 = vpop.f32.mrb[0].mxu0
          %734 = vdwg.mxu0
          %735 = vst.msk [vmem:[#allocation3] sm:$0xff] %vm585, %v697
          %736 = vst.msk [vmem:[#allocation3 + $0x8] sm:$0xff] %vm585, %v702
          %737 = vst.msk [vmem:[#allocation3 + $0x10] sm:$0xff] %vm585, %v707
          %738 = vst.msk [vmem:[#allocation3 + $0x18] sm:$0xff] %vm585, %v712
          %739 = vst.msk [vmem:[#allocation3 + $0x20] sm:$0xff] %vm585, %v717
          %740 = vst.msk [vmem:[#allocation3 + $0x28] sm:$0xff] %vm585, %v722
          %741 = vst.msk [vmem:[#allocation3 + $0x30] sm:$0xff] %vm585, %v727
          %742 = vst.msk [vmem:[#allocation3 + $0x38] sm:$0xff] %vm585, %v732
        $region112: #{tpu_custom_call.1} parent=75 // pred_fallthru
          _
        %v743 = vld [vmem:[#allocation2] sm:$0xff]
        %v744 = vld [vmem:[#allocation11] sm:$0xff]
        %v745 = vld [vmem:[#allocation11 + $0x8] sm:$0xff]
        %v746 = vld [vmem:[#allocation11 + $0x10] sm:$0xff]
        %v747 = vld [vmem:[#allocation11 + $0x18] sm:$0xff]
        %vm748 = vcmask 261120
        %v750 = vsel %vm748, %v743, 0
        %752 = vmatprep.subr.mxu0 0.0
        %753 = vmatpush1.msra.mxu0 %v744
        %754 = vmatprep.subr.mxu0 0.0
        %755 = vmatpush1.msra.mxu0 %v745
        %756 = vmatprep.subr.mxu0 0.0
        %757 = vmatpush1.msra.mxu0 %v746
        %758 = vmatprep.subr.mxu0 0.0
        %759 = vmatpush1.msra.mxu0 %v747
        %760 = vmatprep.subr.mxu0 0.0
        %761 = vmatpush1.msra.mxu0 0.0
        %762 = vmatprep.subr.mxu0 0.0
        %763 = vmatpush1.msra.mxu0 0.0
        %764 = vmatprep.subr.mxu0 0.0
        %765 = vmatpush1.msra.mxu0 0.0
        %766 = vmatprep.subr.mxu0 0.0
        %767 = vmatpush1.msra.mxu0 0.0
        %768 = vmatprep.subr.mxu0 0.0
        %769 = vmatpush1.msra.mxu0 0.0
        %770 = vmatprep.subr.mxu0 0.0
        %771 = vmatpush1.msra.mxu0 0.0
        %772 = vmatprep.subr.mxu0 0.0
        %773 = vmatpush1.msra.mxu0 0.0
        %774 = vmatprep.subr.mxu0 0.0
        %775 = vmatpush1.msra.mxu0 0.0
        %776 = vmatprep.subr.mxu0 0.0
        %777 = vmatpush1.msra.mxu0 0.0
        %778 = vmatprep.subr.mxu0 0.0
        %779 = vmatpush1.msra.mxu0 0.0
        %780 = vmatprep.subr.mxu0 0.0
        %781 = vmatpush1.msra.mxu0 0.0
        %782 = vmatprep.subr.mxu0 0.0
        %783 = vmatpush1.msra.mxu0 0.0
        %784 = vmatprep.subr.mxu0 0.0
        %785 = vmatpush1.msra.mxu0 0.0
        %786 = vmatprep.subr.mxu0 0.0
        %787 = vmatpush1.msra.mxu0 0.0
        %788 = vmatprep.subr.mxu0 0.0
        %789 = vmatpush1.msra.mxu0 0.0
        %790 = vmatprep.subr.mxu0 0.0
        %791 = vmatpush1.msra.mxu0 0.0
        %792 = vmatprep.subr.mxu0 0.0
        %793 = vmatpush1.msra.mxu0 0.0
        %794 = vmatprep.subr.mxu0 0.0
        %795 = vmatpush1.msra.mxu0 0.0
        %796 = vmatprep.subr.mxu0 0.0
        %797 = vmatpush1.msra.mxu0 0.0
        %798 = vmatprep.subr.mxu0 0.0
        %799 = vmatpush1.msra.mxu0 0.0
        %800 = vmatprep.subr.mxu0 0.0
        %801 = vmatpush1.msra.mxu0 0.0
        %802 = vmatprep.subr.mxu0 0.0
        %803 = vmatpush1.msra.mxu0 0.0
        %804 = vmatprep.subr.mxu0 0.0
        %805 = vmatpush1.msra.mxu0 0.0
        %806 = vmatprep.subr.mxu0 0.0
        %807 = vmatpush1.msra.mxu0 0.0
        %808 = vmatprep.subr.mxu0 0.0
        %809 = vmatpush1.msra.mxu0 0.0
        %810 = vmatprep.subr.mxu0 0.0
        %811 = vmatpush1.msra.mxu0 0.0
        %812 = vmatprep.subr.mxu0 0.0
        %813 = vmatpush1.msra.mxu0 0.0
        %814 = vmatprep.subr.mxu0 0.0
        %815 = vmatpush1.msra.mxu0 0.0
        %816 = vmatprep.mubr.f32.mxu0 0.0
        %817 = vmatmul.mubr.f32.gmra.mrb[0].mxu0 %v750
        %v818 = vpop.f32.mrb[0].mxu0
        %v819 = vadd.f32 0.0, %v818
        %v820 = vpop.f32.mrb[0].mxu0
        %821 = vdwg.mxu0
        %v822 = vld [vmem:[#allocation3] sm:$0xff]
        %v823 = vld [vmem:[#allocation3 + $0x8] sm:$0xff]
        %v824 = vld [vmem:[#allocation3 + $0x10] sm:$0xff]
        %v825 = vld [vmem:[#allocation3 + $0x18] sm:$0xff]
        %v826 = vld [vmem:[#allocation3 + $0x20] sm:$0xff]
        %v827 = vld [vmem:[#allocation3 + $0x28] sm:$0xff]
        %v828 = vld [vmem:[#allocation3 + $0x30] sm:$0xff]
        %v829 = vld [vmem:[#allocation3 + $0x38] sm:$0xff]
        %v831 = vcombine.high %v819, %v819
        %v833 = vunpack.c.l.s4 1966171168
        %v834 = vunpack.c.0.s8 %v833
        %v835 = vlaneseq
        %v836 = vshrl.u32 %v835, 7
        %v837 = vsub.s32 %v834, %v836
        %v838 = vrot.slane %v819, %v837
        %v840 = vunpack.c.l.s4 1966171168
        %v841 = vunpack.c.0.s8 %v840
        %v842 = vlaneseq
        %v843 = vshrl.u32 %v842, 7
        %v844 = vsub.s32 %v841, %v843
        %v845 = vrot.slane %v831, %v844
        %v846 = vcombine.high %v838, %v838
        %v847 = vcombine.high %v845, %v845
        %v849 = vunpack.c.l.s4 1966171168
        %v850 = vunpack.c.0.s8 %v849
        %v851 = vlaneseq
        %v852 = vshrl.u32 %v851, 7
        %v853 = vsub.s32 %v850, %v852
        %v854 = vrot.slane %v838, %v853
        %v856 = vunpack.c.l.s4 1966171168
        %v857 = vunpack.c.0.s8 %v856
        %v858 = vlaneseq
        %v859 = vshrl.u32 %v858, 7
        %v860 = vsub.s32 %v857, %v859
        %v861 = vrot.slane %v845, %v860
        %v863 = vunpack.c.l.s4 1966171168
        %v864 = vunpack.c.0.s8 %v863
        %v865 = vlaneseq
        %v866 = vshrl.u32 %v865, 7
        %v867 = vsub.s32 %v864, %v866
        %v868 = vrot.slane %v846, %v867
        %v870 = vunpack.c.l.s4 1966171168
        %v871 = vunpack.c.0.s8 %v870
        %v872 = vlaneseq
        %v873 = vshrl.u32 %v872, 7
        %v874 = vsub.s32 %v871, %v873
        %v875 = vrot.slane %v847, %v874
        %v876 = vcombine.high %v854, %v854
        %v877 = vcombine.high %v861, %v861
        %v878 = vcombine.high %v868, %v868
        %v879 = vcombine.high %v875, %v875
        %v880 = vlaneseq
        %v881 = vshrl.u32 %v880, 7
        %v882 = vsub.s32 0, %v881
        %v883 = vrot.slane %v854, %v882
        %v884 = vlaneseq
        %v885 = vshrl.u32 %v884, 7
        %v886 = vsub.s32 0, %v885
        %v887 = vrot.slane %v868, %v886
        %v888 = vlaneseq
        %v889 = vshrl.u32 %v888, 7
        %v890 = vsub.s32 0, %v889
        %v891 = vrot.slane %v876, %v890
        %v892 = vlaneseq
        %v893 = vshrl.u32 %v892, 7
        %v894 = vsub.s32 0, %v893
        %v895 = vrot.slane %v878, %v894
        %v896 = vlaneseq
        %v897 = vshrl.u32 %v896, 7
        %v898 = vsub.s32 0, %v897
        %v899 = vrot.slane %v861, %v898
        %v900 = vlaneseq
        %v901 = vshrl.u32 %v900, 7
        %v902 = vsub.s32 0, %v901
        %v903 = vrot.slane %v875, %v902
        %v904 = vlaneseq
        %v905 = vshrl.u32 %v904, 7
        %v906 = vsub.s32 0, %v905
        %v907 = vrot.slane %v877, %v906
        %v908 = vlaneseq
        %v909 = vshrl.u32 %v908, 7
        %v910 = vsub.s32 0, %v909
        %v911 = vrot.slane %v879, %v910
        %v920 = vadd.f32 %v822, %v883
        %v921 = vadd.f32 %v823, %v887
        %v922 = vadd.f32 %v824, %v891
        %v923 = vadd.f32 %v825, %v895
        %v924 = vadd.f32 %v826, %v899
        %v925 = vadd.f32 %v827, %v903
        %v926 = vadd.f32 %v828, %v907
        %v927 = vadd.f32 %v829, %v911
        %v928 = vtanh.pop %v920
        %v929 = vtanh.pop %v921
        %v930 = vtanh.pop %v922
        %v931 = vtanh.pop %v923
        %v932 = vtanh.pop %v924
        %v933 = vtanh.pop %v925
        %v934 = vtanh.pop %v926
        %v935 = vtanh.pop %v927
        %v936 = vld [vmem:[#allocation13] sm:$0xff]
        %v937 = vld [vmem:[#allocation13 + $0x8] sm:$0xff]
        %v938 = vld [vmem:[#allocation13 + $0x10] sm:$0xff]
        %v939 = vld [vmem:[#allocation13 + $0x18] sm:$0xff]
        %v940 = vld [vmem:[%s7] sm:$0x1]
        %v942 = vlaneseq
        %v943 = vshrl.u32 %v942, 7
        %v944 = vsub.s32 0, %v943
        %v945 = vrot.slane %v940, %v944
        %v948 = vsel %vm748, %v928, 0
        %v951 = vsel %vm748, %v929, 0
        %v954 = vsel %vm748, %v930, 0
        %v957 = vsel %vm748, %v931, 0
        %v960 = vsel %vm748, %v932, 0
        %v963 = vsel %vm748, %v933, 0
        %v966 = vsel %vm748, %v934, 0
        %v969 = vsel %vm748, %v935, 0
        %971 = vmatprep.subr.mxu0 0.0
        %972 = vmatpush1.msra.mxu0 %v936
        %973 = vmatprep.subr.mxu0 0.0
        %974 = vmatpush1.msra.mxu0 %v937
        %975 = vmatprep.subr.mxu0 0.0
        %976 = vmatpush1.msra.mxu0 %v938
        %977 = vmatprep.subr.mxu0 0.0
        %978 = vmatpush1.msra.mxu0 %v939
        %979 = vmatprep.subr.mxu0 0.0
        %980 = vmatpush1.msra.mxu0 0.0
        %981 = vmatprep.subr.mxu0 0.0
        %982 = vmatpush1.msra.mxu0 0.0
        %983 = vmatprep.subr.mxu0 0.0
        %984 = vmatpush1.msra.mxu0 0.0
        %985 = vmatprep.subr.mxu0 0.0
        %986 = vmatpush1.msra.mxu0 0.0
        %987 = vmatprep.subr.mxu0 0.0
        %988 = vmatpush1.msra.mxu0 0.0
        %989 = vmatprep.subr.mxu0 0.0
        %990 = vmatpush1.msra.mxu0 0.0
        %991 = vmatprep.subr.mxu0 0.0
        %992 = vmatpush1.msra.mxu0 0.0
        %993 = vmatprep.subr.mxu0 0.0
        %994 = vmatpush1.msra.mxu0 0.0
        %995 = vmatprep.subr.mxu0 0.0
        %996 = vmatpush1.msra.mxu0 0.0
        %997 = vmatprep.subr.mxu0 0.0
        %998 = vmatpush1.msra.mxu0 0.0
        %999 = vmatprep.subr.mxu0 0.0
        %1000 = vmatpush1.msra.mxu0 0.0
        %1001 = vmatprep.subr.mxu0 0.0
        %1002 = vmatpush1.msra.mxu0 0.0
        %1003 = vmatprep.subr.mxu0 0.0
        %1004 = vmatpush1.msra.mxu0 0.0
        %1005 = vmatprep.subr.mxu0 0.0
        %1006 = vmatpush1.msra.mxu0 0.0
        %1007 = vmatprep.subr.mxu0 0.0
        %1008 = vmatpush1.msra.mxu0 0.0
        %1009 = vmatprep.subr.mxu0 0.0
        %1010 = vmatpush1.msra.mxu0 0.0
        %1011 = vmatprep.subr.mxu0 0.0
        %1012 = vmatpush1.msra.mxu0 0.0
        %1013 = vmatprep.subr.mxu0 0.0
        %1014 = vmatpush1.msra.mxu0 0.0
        %1015 = vmatprep.subr.mxu0 0.0
        %1016 = vmatpush1.msra.mxu0 0.0
        %1017 = vmatprep.subr.mxu0 0.0
        %1018 = vmatpush1.msra.mxu0 0.0
        %1019 = vmatprep.subr.mxu0 0.0
        %1020 = vmatpush1.msra.mxu0 0.0
        %1021 = vmatprep.subr.mxu0 0.0
        %1022 = vmatpush1.msra.mxu0 0.0
        %1023 = vmatprep.subr.mxu0 0.0
        %1024 = vmatpush1.msra.mxu0 0.0
        %1025 = vmatprep.subr.mxu0 0.0
        %1026 = vmatpush1.msra.mxu0 0.0
        %1027 = vmatprep.subr.mxu0 0.0
        %1028 = vmatpush1.msra.mxu0 0.0
        %1029 = vmatprep.subr.mxu0 0.0
        %1030 = vmatpush1.msra.mxu0 0.0
        %1031 = vmatprep.subr.mxu0 0.0
        %1032 = vmatpush1.msra.mxu0 0.0
        %1033 = vmatprep.subr.mxu0 0.0
        %1034 = vmatpush1.msra.mxu0 0.0
        %1035 = vmatprep.mubr.f32.mxu0 0.0
        %1036 = vmatmul.mubr.f32.gmra.mrb[0].mxu0 %v948
        %v1037 = vpop.f32.mrb[0].mxu0
        %v1038 = vadd.f32 %v945, %v1037
        %v1039 = vpop.f32.mrb[0].mxu0
        %1040 = vmatprep.mubr.f32.mxu0 0.0
        %1041 = vmatmul.mubr.f32.gmra.mrb[0].mxu0 %v951
        %v1042 = vpop.f32.mrb[0].mxu0
        %v1043 = vadd.f32 %v945, %v1042
        %v1044 = vpop.f32.mrb[0].mxu0
        %1045 = vmatprep.mubr.f32.mxu0 0.0
        %1046 = vmatmul.mubr.f32.gmra.mrb[0].mxu0 %v954
        %v1047 = vpop.f32.mrb[0].mxu0
        %v1048 = vadd.f32 %v945, %v1047
        %v1049 = vpop.f32.mrb[0].mxu0
        %1050 = vmatprep.mubr.f32.mxu0 0.0
        %1051 = vmatmul.mubr.f32.gmra.mrb[0].mxu0 %v957
        %v1052 = vpop.f32.mrb[0].mxu0
        %v1053 = vadd.f32 %v945, %v1052
        %v1054 = vpop.f32.mrb[0].mxu0
        %1055 = vmatprep.mubr.f32.mxu0 0.0
        %1056 = vmatmul.mubr.f32.gmra.mrb[0].mxu0 %v960
        %v1057 = vpop.f32.mrb[0].mxu0
        %v1058 = vadd.f32 %v945, %v1057
        %v1059 = vpop.f32.mrb[0].mxu0
        %1060 = vmatprep.mubr.f32.mxu0 0.0
        %1061 = vmatmul.mubr.f32.gmra.mrb[0].mxu0 %v963
        %v1062 = vpop.f32.mrb[0].mxu0
        %v1063 = vadd.f32 %v945, %v1062
        %v1064 = vpop.f32.mrb[0].mxu0
        %1065 = vmatprep.mubr.f32.mxu0 0.0
        %1066 = vmatmul.mubr.f32.gmra.mrb[0].mxu0 %v966
        %v1067 = vpop.f32.mrb[0].mxu0
        %v1068 = vadd.f32 %v945, %v1067
        %v1069 = vpop.f32.mrb[0].mxu0
        %1070 = vmatprep.mubr.f32.mxu0 0.0
        %1071 = vmatmul.mubr.f32.gmra.mrb[0].mxu0 %v969
        %v1072 = vpop.f32.mrb[0].mxu0
        %v1073 = vadd.f32 %v945, %v1072
        %v1074 = vpop.f32.mrb[0].mxu0
        %1075 = vdwg.mxu0
        %v1076 = vtanh.pop %v1038
        %v1077 = vtanh.pop %v1043
        %v1078 = vtanh.pop %v1048
        %v1079 = vtanh.pop %v1053
        %v1080 = vtanh.pop %v1058
        %v1081 = vtanh.pop %v1063
        %v1082 = vtanh.pop %v1068
        %v1083 = vtanh.pop %v1073
        %v1084 = vld [vmem:[#allocation14] sm:$0xff]
        %v1085 = vld [vmem:[#allocation14 + $0x8] sm:$0xff]
        %v1086 = vld [vmem:[#allocation14 + $0x10] sm:$0xff]
        %v1087 = vld [vmem:[#allocation14 + $0x18] sm:$0xff]
        %v1088 = vld [vmem:[%s9] sm:$0x1]
        %v1090 = vlaneseq
        %v1091 = vshrl.u32 %v1090, 7
        %v1092 = vsub.s32 0, %v1091
        %v1093 = vrot.slane %v1088, %v1092
        %v1096 = vsel %vm748, %v1076, 0
        %v1099 = vsel %vm748, %v1077, 0
        %v1102 = vsel %vm748, %v1078, 0
        %v1105 = vsel %vm748, %v1079, 0
        %v1108 = vsel %vm748, %v1080, 0
        %v1111 = vsel %vm748, %v1081, 0
        %v1114 = vsel %vm748, %v1082, 0
        %v1117 = vsel %vm748, %v1083, 0
        %1119 = vmatprep.subr.mxu0 0.0
        %1120 = vmatpush1.msra.mxu0 %v1084
        %1121 = vmatprep.subr.mxu0 0.0
        %1122 = vmatpush1.msra.mxu0 %v1085
        %1123 = vmatprep.subr.mxu0 0.0
        %1124 = vmatpush1.msra.mxu0 %v1086
        %1125 = vmatprep.subr.mxu0 0.0
        %1126 = vmatpush1.msra.mxu0 %v1087
        %1127 = vmatprep.subr.mxu0 0.0
        %1128 = vmatpush1.msra.mxu0 0.0
        %1129 = vmatprep.subr.mxu0 0.0
        %1130 = vmatpush1.msra.mxu0 0.0
        %1131 = vmatprep.subr.mxu0 0.0
        %1132 = vmatpush1.msra.mxu0 0.0
        %1133 = vmatprep.subr.mxu0 0.0
        %1134 = vmatpush1.msra.mxu0 0.0
        %1135 = vmatprep.subr.mxu0 0.0
        %1136 = vmatpush1.msra.mxu0 0.0
        %1137 = vmatprep.subr.mxu0 0.0
        %1138 = vmatpush1.msra.mxu0 0.0
        %1139 = vmatprep.subr.mxu0 0.0
        %1140 = vmatpush1.msra.mxu0 0.0
        %1141 = vmatprep.subr.mxu0 0.0
        %1142 = vmatpush1.msra.mxu0 0.0
        %1143 = vmatprep.subr.mxu0 0.0
        %1144 = vmatpush1.msra.mxu0 0.0
        %1145 = vmatprep.subr.mxu0 0.0
        %1146 = vmatpush1.msra.mxu0 0.0
        %1147 = vmatprep.subr.mxu0 0.0
        %1148 = vmatpush1.msra.mxu0 0.0
        %1149 = vmatprep.subr.mxu0 0.0
        %1150 = vmatpush1.msra.mxu0 0.0
        %1151 = vmatprep.subr.mxu0 0.0
        %1152 = vmatpush1.msra.mxu0 0.0
        %1153 = vmatprep.subr.mxu0 0.0
        %1154 = vmatpush1.msra.mxu0 0.0
        %1155 = vmatprep.subr.mxu0 0.0
        %1156 = vmatpush1.msra.mxu0 0.0
        %1157 = vmatprep.subr.mxu0 0.0
        %1158 = vmatpush1.msra.mxu0 0.0
        %1159 = vmatprep.subr.mxu0 0.0
        %1160 = vmatpush1.msra.mxu0 0.0
        %1161 = vmatprep.subr.mxu0 0.0
        %1162 = vmatpush1.msra.mxu0 0.0
        %1163 = vmatprep.subr.mxu0 0.0
        %1164 = vmatpush1.msra.mxu0 0.0
        %1165 = vmatprep.subr.mxu0 0.0
        %1166 = vmatpush1.msra.mxu0 0.0
        %1167 = vmatprep.subr.mxu0 0.0
        %1168 = vmatpush1.msra.mxu0 0.0
        %1169 = vmatprep.subr.mxu0 0.0
        %1170 = vmatpush1.msra.mxu0 0.0
        %1171 = vmatprep.subr.mxu0 0.0
        %1172 = vmatpush1.msra.mxu0 0.0
        %1173 = vmatprep.subr.mxu0 0.0
        %1174 = vmatpush1.msra.mxu0 0.0
        %1175 = vmatprep.subr.mxu0 0.0
        %1176 = vmatpush1.msra.mxu0 0.0
        %1177 = vmatprep.subr.mxu0 0.0
        %1178 = vmatpush1.msra.mxu0 0.0
        %1179 = vmatprep.subr.mxu0 0.0
        %1180 = vmatpush1.msra.mxu0 0.0
        %1181 = vmatprep.subr.mxu0 0.0
        %1182 = vmatpush1.msra.mxu0 0.0
        %1183 = vmatprep.mubr.f32.mxu0 0.0
        %1184 = vmatmul.mubr.f32.gmra.mrb[0].mxu0 %v1096
        %v1185 = vpop.f32.mrb[0].mxu0
        %v1186 = vadd.f32 %v1093, %v1185
        %v1187 = vpop.f32.mrb[0].mxu0
        %1188 = vmatprep.mubr.f32.mxu0 0.0
        %1189 = vmatmul.mubr.f32.gmra.mrb[0].mxu0 %v1099
        %v1190 = vpop.f32.mrb[0].mxu0
        %v1191 = vadd.f32 %v1093, %v1190
        %v1192 = vpop.f32.mrb[0].mxu0
        %1193 = vmatprep.mubr.f32.mxu0 0.0
        %1194 = vmatmul.mubr.f32.gmra.mrb[0].mxu0 %v1102
        %v1195 = vpop.f32.mrb[0].mxu0
        %v1196 = vadd.f32 %v1093, %v1195
        %v1197 = vpop.f32.mrb[0].mxu0
        %1198 = vmatprep.mubr.f32.mxu0 0.0
        %1199 = vmatmul.mubr.f32.gmra.mrb[0].mxu0 %v1105
        %v1200 = vpop.f32.mrb[0].mxu0
        %v1201 = vadd.f32 %v1093, %v1200
        %v1202 = vpop.f32.mrb[0].mxu0
        %1203 = vmatprep.mubr.f32.mxu0 0.0
        %1204 = vmatmul.mubr.f32.gmra.mrb[0].mxu0 %v1108
        %v1205 = vpop.f32.mrb[0].mxu0
        %v1206 = vadd.f32 %v1093, %v1205
        %v1207 = vpop.f32.mrb[0].mxu0
        %1208 = vmatprep.mubr.f32.mxu0 0.0
        %1209 = vmatmul.mubr.f32.gmra.mrb[0].mxu0 %v1111
        %v1210 = vpop.f32.mrb[0].mxu0
        %v1211 = vadd.f32 %v1093, %v1210
        %v1212 = vpop.f32.mrb[0].mxu0
        %1213 = vmatprep.mubr.f32.mxu0 0.0
        %1214 = vmatmul.mubr.f32.gmra.mrb[0].mxu0 %v1114
        %v1215 = vpop.f32.mrb[0].mxu0
        %v1216 = vadd.f32 %v1093, %v1215
        %v1217 = vpop.f32.mrb[0].mxu0
        %1218 = vmatprep.mubr.f32.mxu0 0.0
        %1219 = vmatmul.mubr.f32.gmra.mrb[0].mxu0 %v1117
        %v1220 = vpop.f32.mrb[0].mxu0
        %v1221 = vadd.f32 %v1093, %v1220
        %v1222 = vpop.f32.mrb[0].mxu0
        %1223 = vdwg.mxu0
        %v1224 = vtanh.pop %v1186
        %v1225 = vtanh.pop %v1191
        %v1226 = vtanh.pop %v1196
        %v1227 = vtanh.pop %v1201
        %v1228 = vtanh.pop %v1206
        %v1229 = vtanh.pop %v1211
        %v1230 = vtanh.pop %v1216
        %v1231 = vtanh.pop %v1221
        %v1232 = vld [vmem:[%s10] sm:$0x1]
        %v1234 = vlaneseq
        %v1235 = vshrl.u32 %v1234, 7
        %v1236 = vsub.s32 0, %v1235
        %v1237 = vrot.slane %v1232, %v1236
        %v1239 = vmul.f32 %v1224, %v1237
        %v1240 = vmul.f32 %v1225, %v1237
        %v1241 = vmul.f32 %v1226, %v1237
        %v1242 = vmul.f32 %v1227, %v1237
        %v1243 = vmul.f32 %v1228, %v1237
        %v1244 = vmul.f32 %v1229, %v1237
        %v1245 = vmul.f32 %v1230, %v1237
        %v1246 = vmul.f32 %v1231, %v1237
        %v1247 = vsel %vm748, %v1239, 0.0
        %1248 = vadd.xlane.f32.xlu0 %v1247
        %v1249 = vpop.xlane.xlu0 %1248
        %v1250 = vsel %vm748, %v1240, 0.0
        %1251 = vadd.xlane.f32.xlu0 %v1250
        %v1252 = vpop.xlane.xlu0 %1251
        %v1253 = vsel %vm748, %v1241, 0.0
        %1254 = vadd.xlane.f32.xlu0 %v1253
        %v1255 = vpop.xlane.xlu0 %1254
        %v1256 = vsel %vm748, %v1242, 0.0
        %1257 = vadd.xlane.f32.xlu0 %v1256
        %v1258 = vpop.xlane.xlu0 %1257
        %v1259 = vsel %vm748, %v1243, 0.0
        %1260 = vadd.xlane.f32.xlu0 %v1259
        %v1261 = vpop.xlane.xlu0 %1260
        %v1262 = vsel %vm748, %v1244, 0.0
        %1263 = vadd.xlane.f32.xlu0 %v1262
        %v1264 = vpop.xlane.xlu0 %1263
        %v1265 = vsel %vm748, %v1245, 0.0
        %1266 = vadd.xlane.f32.xlu0 %v1265
        %v1267 = vpop.xlane.xlu0 %1266
        %v1268 = vsel %vm748, %v1246, 0.0
        %1269 = vadd.xlane.f32.xlu0 %v1268
        %v1270 = vpop.xlane.xlu0 %1269
        %v1279 = vlaneseq
        %v1280 = vand.u32 %v1279, 127
        %v1281 = vlaneseq
        %v1282 = vshrl.u32 %v1281, 7
        %v1283 = vsub.s32 %v1280, %v1282
        %v1284 = vrot.slane %v1249, %v1283
        %v1285 = vlaneseq
        %v1286 = vshrl.u32 %v1285, 7
        %v1287 = vsub.s32 %v1280, %v1286
        %v1288 = vrot.slane %v1252, %v1287
        %v1289 = vlaneseq
        %v1290 = vshrl.u32 %v1289, 7
        %v1291 = vsub.s32 %v1280, %v1290
        %v1292 = vrot.slane %v1255, %v1291
        %v1293 = vlaneseq
        %v1294 = vshrl.u32 %v1293, 7
        %v1295 = vsub.s32 %v1280, %v1294
        %v1296 = vrot.slane %v1258, %v1295
        %v1297 = vlaneseq
        %v1298 = vshrl.u32 %v1297, 7
        %v1299 = vsub.s32 %v1280, %v1298
        %v1300 = vrot.slane %v1261, %v1299
        %v1301 = vlaneseq
        %v1302 = vshrl.u32 %v1301, 7
        %v1303 = vsub.s32 %v1280, %v1302
        %v1304 = vrot.slane %v1264, %v1303
        %v1305 = vlaneseq
        %v1306 = vshrl.u32 %v1305, 7
        %v1307 = vsub.s32 %v1280, %v1306
        %v1308 = vrot.slane %v1267, %v1307
        %v1309 = vlaneseq
        %v1310 = vshrl.u32 %v1309, 7
        %v1311 = vsub.s32 %v1280, %v1310
        %v1312 = vrot.slane %v1270, %v1311
        %vm1313 = vcmask 1041409
        %v1314 = vsel %vm1313, %v1288, %v1284
        %vm1315 = vcmask 1042434
        %v1316 = vsel %vm1315, %v1292, %v1314
        %vm1317 = vcmask 1043459
        %v1318 = vsel %vm1317, %v1296, %v1316
        %vm1319 = vcmask 1044484
        %v1320 = vsel %vm1319, %v1300, %v1318
        %vm1321 = vcmask 1045509
        %v1322 = vsel %vm1321, %v1304, %v1320
        %vm1323 = vcmask 1046534
        %v1324 = vsel %vm1323, %v1308, %v1322
        %vm1325 = vcmask 1047559
        %v1326 = vsel %vm1325, %v1312, %v1324
        %vm1328 = vcmask 64512
        %v1329 = vsel %vm1328, %v1326, -inf
        %1330 = vmax.xlane.f32.xlu0 %v1329
        %v1331 = vpop.xlane.xlu0 %1330
        %v1333 = vlaneseq
        %v1334 = vshrl.u32 %v1333, 7
        %v1335 = vsub.s32 0, %v1334
        %v1336 = vrot.slane %v1331, %v1335
        %v1337 = vlaneseq
        %v1338 = vshrl.u32 %v1337, 7
        %v1339 = vsub.s32 1, %v1338
        %v1340 = vrot.slane %v1331, %v1339
        %v1341 = vlaneseq
        %v1342 = vshrl.u32 %v1341, 7
        %v1343 = vsub.s32 2, %v1342
        %v1344 = vrot.slane %v1331, %v1343
        %v1345 = vlaneseq
        %v1346 = vshrl.u32 %v1345, 7
        %v1347 = vsub.s32 3, %v1346
        %v1348 = vrot.slane %v1331, %v1347
        %v1349 = vlaneseq
        %v1350 = vshrl.u32 %v1349, 7
        %v1351 = vsub.s32 4, %v1350
        %v1352 = vrot.slane %v1331, %v1351
        %v1353 = vlaneseq
        %v1354 = vshrl.u32 %v1353, 7
        %v1355 = vsub.s32 5, %v1354
        %v1356 = vrot.slane %v1331, %v1355
        %v1357 = vlaneseq
        %v1358 = vshrl.u32 %v1357, 7
        %v1359 = vsub.s32 6, %v1358
        %v1360 = vrot.slane %v1331, %v1359
        %v1361 = vlaneseq
        %v1362 = vshrl.u32 %v1361, 7
        %v1363 = vsub.s32 7, %v1362
        %v1364 = vrot.slane %v1331, %v1363
        %v1373 = vsub.f32 %v1249, %v1336
        %v1374 = vsub.f32 %v1252, %v1340
        %v1375 = vsub.f32 %v1255, %v1344
        %v1376 = vsub.f32 %v1258, %v1348
        %v1377 = vsub.f32 %v1261, %v1352
        %v1378 = vsub.f32 %v1264, %v1356
        %v1379 = vsub.f32 %v1267, %v1360
        %v1380 = vsub.f32 %v1270, %v1364
        %v1381 = vmul.f32 %v1373, 1.442695
        %v1382 = vpow.pop %v1381
        %v1383 = vmul.f32 %v1374, 1.442695
        %v1384 = vpow.pop %v1383
        %v1385 = vmul.f32 %v1375, 1.442695
        %v1386 = vpow.pop %v1385
        %v1387 = vmul.f32 %v1376, 1.442695
        %v1388 = vpow.pop %v1387
        %v1389 = vmul.f32 %v1377, 1.442695
        %v1390 = vpow.pop %v1389
        %v1391 = vmul.f32 %v1378, 1.442695
        %v1392 = vpow.pop %v1391
        %v1393 = vmul.f32 %v1379, 1.442695
        %v1394 = vpow.pop %v1393
        %v1395 = vmul.f32 %v1380, 1.442695
        %v1396 = vpow.pop %v1395
        %1405 = vset.pattern.permute.xlu0 0
        %1406 = vperm.xlu0 %1405, %v1382
        %v1407 = vpop.permute.xlu0 %1406
        %1408 = vset.pattern.permute.xlu0 0
        %1409 = vperm.xlu0 %1408, %v1384
        %v1410 = vpop.permute.xlu0 %1409
        %1411 = vset.pattern.permute.xlu0 0
        %1412 = vperm.xlu0 %1411, %v1386
        %v1413 = vpop.permute.xlu0 %1412
        %1414 = vset.pattern.permute.xlu0 0
        %1415 = vperm.xlu0 %1414, %v1388
        %v1416 = vpop.permute.xlu0 %1415
        %1417 = vset.pattern.permute.xlu0 0
        %1418 = vperm.xlu0 %1417, %v1390
        %v1419 = vpop.permute.xlu0 %1418
        %1420 = vset.pattern.permute.xlu0 0
        %1421 = vperm.xlu0 %1420, %v1392
        %v1422 = vpop.permute.xlu0 %1421
        %1423 = vset.pattern.permute.xlu0 0
        %1424 = vperm.xlu0 %1423, %v1394
        %v1425 = vpop.permute.xlu0 %1424
        %1426 = vset.pattern.permute.xlu0 0
        %1427 = vperm.xlu0 %1426, %v1396
        %v1428 = vpop.permute.xlu0 %1427
        %v1429 = vlaneseq
        %v1430 = vshrl.u32 %v1429, 7
        %v1431 = vsub.s32 %v1280, %v1430
        %v1432 = vrot.slane %v1407, %v1431
        %v1433 = vlaneseq
        %v1434 = vshrl.u32 %v1433, 7
        %v1435 = vsub.s32 %v1280, %v1434
        %v1436 = vrot.slane %v1410, %v1435
        %v1437 = vlaneseq
        %v1438 = vshrl.u32 %v1437, 7
        %v1439 = vsub.s32 %v1280, %v1438
        %v1440 = vrot.slane %v1413, %v1439
        %v1441 = vlaneseq
        %v1442 = vshrl.u32 %v1441, 7
        %v1443 = vsub.s32 %v1280, %v1442
        %v1444 = vrot.slane %v1416, %v1443
        %v1445 = vlaneseq
        %v1446 = vshrl.u32 %v1445, 7
        %v1447 = vsub.s32 %v1280, %v1446
        %v1448 = vrot.slane %v1419, %v1447
        %v1449 = vlaneseq
        %v1450 = vshrl.u32 %v1449, 7
        %v1451 = vsub.s32 %v1280, %v1450
        %v1452 = vrot.slane %v1422, %v1451
        %v1453 = vlaneseq
        %v1454 = vshrl.u32 %v1453, 7
        %v1455 = vsub.s32 %v1280, %v1454
        %v1456 = vrot.slane %v1425, %v1455
        %v1457 = vlaneseq
        %v1458 = vshrl.u32 %v1457, 7
        %v1459 = vsub.s32 %v1280, %v1458
        %v1460 = vrot.slane %v1428, %v1459
        %v1461 = vsel %vm1313, %v1436, %v1432
        %v1462 = vsel %vm1315, %v1440, %v1461
        %v1463 = vsel %vm1317, %v1444, %v1462
        %v1464 = vsel %vm1319, %v1448, %v1463
        %v1465 = vsel %vm1321, %v1452, %v1464
        %v1466 = vsel %vm1323, %v1456, %v1465
        %v1467 = vsel %vm1325, %v1460, %v1466
        %v1469 = vsel %vm1328, %v1467, 0.0
        %1470 = vadd.xlane.f32.xlu0 %v1469
        %v1471 = vpop.xlane.xlu0 %1470
        %v1472 = vrcp.pop %v1471
        %v1474 = vlaneseq
        %v1475 = vshrl.u32 %v1474, 7
        %v1476 = vsub.s32 0, %v1475
        %v1477 = vrot.slane %v1472, %v1476
        %v1478 = vlaneseq
        %v1479 = vshrl.u32 %v1478, 7
        %v1480 = vsub.s32 1, %v1479
        %v1481 = vrot.slane %v1472, %v1480
        %v1482 = vlaneseq
        %v1483 = vshrl.u32 %v1482, 7
        %v1484 = vsub.s32 2, %v1483
        %v1485 = vrot.slane %v1472, %v1484
        %v1486 = vlaneseq
        %v1487 = vshrl.u32 %v1486, 7
        %v1488 = vsub.s32 3, %v1487
        %v1489 = vrot.slane %v1472, %v1488
        %v1490 = vlaneseq
        %v1491 = vshrl.u32 %v1490, 7
        %v1492 = vsub.s32 4, %v1491
        %v1493 = vrot.slane %v1472, %v1492
        %v1494 = vlaneseq
        %v1495 = vshrl.u32 %v1494, 7
        %v1496 = vsub.s32 5, %v1495
        %v1497 = vrot.slane %v1472, %v1496
        %v1498 = vlaneseq
        %v1499 = vshrl.u32 %v1498, 7
        %v1500 = vsub.s32 6, %v1499
        %v1501 = vrot.slane %v1472, %v1500
        %v1502 = vlaneseq
        %v1503 = vshrl.u32 %v1502, 7
        %v1504 = vsub.s32 7, %v1503
        %v1505 = vrot.slane %v1472, %v1504
        %v1514 = vmul.f32 %v1382, %v1477
        %v1515 = vmul.f32 %v1384, %v1481
        %v1516 = vmul.f32 %v1386, %v1485
        %v1517 = vmul.f32 %v1388, %v1489
        %v1518 = vmul.f32 %v1390, %v1493
        %v1519 = vmul.f32 %v1392, %v1497
        %v1520 = vmul.f32 %v1394, %v1501
        %v1521 = vmul.f32 %v1396, %v1505
        %v1522 = vld [vmem:[#allocation4] sm:$0xff]
        %v1523 = vld [vmem:[#allocation4 + $0x8] sm:$0xff]
        %v1524 = vld [vmem:[#allocation4 + $0x10] sm:$0xff]
        %v1525 = vld [vmem:[#allocation4 + $0x18] sm:$0xff]
        %v1526 = vld [vmem:[#allocation4 + $0x20] sm:$0xff]
        %v1527 = vld [vmem:[#allocation4 + $0x28] sm:$0xff]
        %v1528 = vld [vmem:[#allocation4 + $0x30] sm:$0xff]
        %v1529 = vld [vmem:[#allocation4 + $0x38] sm:$0xff]
        %1531 = vset.pattern.permute.xlu0 0
        %1532 = vperm.xlu0 %1531, %v1514
        %v1533 = vpop.permute.xlu0 %1532
        %1536 = vset.pattern.permute.xlu0 0
        %1537 = vperm.xlu0 %1536, %v1515
        %v1538 = vpop.permute.xlu0 %1537
        %1541 = vset.pattern.permute.xlu0 0
        %1542 = vperm.xlu0 %1541, %v1516
        %v1543 = vpop.permute.xlu0 %1542
        %1546 = vset.pattern.permute.xlu0 0
        %1547 = vperm.xlu0 %1546, %v1517
        %v1548 = vpop.permute.xlu0 %1547
        %1551 = vset.pattern.permute.xlu0 0
        %1552 = vperm.xlu0 %1551, %v1518
        %v1553 = vpop.permute.xlu0 %1552
        %1556 = vset.pattern.permute.xlu0 0
        %1557 = vperm.xlu0 %1556, %v1519
        %v1558 = vpop.permute.xlu0 %1557
        %1561 = vset.pattern.permute.xlu0 0
        %1562 = vperm.xlu0 %1561, %v1520
        %v1563 = vpop.permute.xlu0 %1562
        %1566 = vset.pattern.permute.xlu0 0
        %1567 = vperm.xlu0 %1566, %v1521
        %v1568 = vpop.permute.xlu0 %1567
        %v1570 = vmul.f32 %v1533, %v1522
        %v1571 = vmul.f32 %v1538, %v1523
        %v1572 = vmul.f32 %v1543, %v1524
        %v1573 = vmul.f32 %v1548, %v1525
        %v1574 = vmul.f32 %v1553, %v1526
        %v1575 = vmul.f32 %v1558, %v1527
        %v1576 = vmul.f32 %v1563, %v1528
        %v1577 = vmul.f32 %v1568, %v1529
        %v1578 = vsel %vm748, %v1570, 0.0
        %v1579 = vrot.slane %v1578, 4
        %v1580 = vadd.f32 %v1578, %v1579
        %v1581 = vrot.slane %v1580, 2
        %v1582 = vadd.f32 %v1580, %v1581
        %v1583 = vrot.slane %v1582, 1
        %v1584 = vadd.f32 %v1582, %v1583
        %v1585 = vsel %vm748, %v1571, 0.0
        %v1586 = vrot.slane %v1585, 4
        %v1587 = vadd.f32 %v1585, %v1586
        %v1588 = vrot.slane %v1587, 2
        %v1589 = vadd.f32 %v1587, %v1588
        %v1590 = vrot.slane %v1589, 1
        %v1591 = vadd.f32 %v1589, %v1590
        %v1592 = vsel %vm748, %v1572, 0.0
        %v1593 = vrot.slane %v1592, 4
        %v1594 = vadd.f32 %v1592, %v1593
        %v1595 = vrot.slane %v1594, 2
        %v1596 = vadd.f32 %v1594, %v1595
        %v1597 = vrot.slane %v1596, 1
        %v1598 = vadd.f32 %v1596, %v1597
        %v1599 = vsel %vm748, %v1573, 0.0
        %v1600 = vrot.slane %v1599, 4
        %v1601 = vadd.f32 %v1599, %v1600
        %v1602 = vrot.slane %v1601, 2
        %v1603 = vadd.f32 %v1601, %v1602
        %v1604 = vrot.slane %v1603, 1
        %v1605 = vadd.f32 %v1603, %v1604
        %v1606 = vsel %vm748, %v1574, 0.0
        %v1607 = vrot.slane %v1606, 4
        %v1608 = vadd.f32 %v1606, %v1607
        %v1609 = vrot.slane %v1608, 2
        %v1610 = vadd.f32 %v1608, %v1609
        %v1611 = vrot.slane %v1610, 1
        %v1612 = vadd.f32 %v1610, %v1611
        %v1613 = vsel %vm748, %v1575, 0.0
        %v1614 = vrot.slane %v1613, 4
        %v1615 = vadd.f32 %v1613, %v1614
        %v1616 = vrot.slane %v1615, 2
        %v1617 = vadd.f32 %v1615, %v1616
        %v1618 = vrot.slane %v1617, 1
        %v1619 = vadd.f32 %v1617, %v1618
        %v1620 = vsel %vm748, %v1576, 0.0
        %v1621 = vrot.slane %v1620, 4
        %v1622 = vadd.f32 %v1620, %v1621
        %v1623 = vrot.slane %v1622, 2
        %v1624 = vadd.f32 %v1622, %v1623
        %v1625 = vrot.slane %v1624, 1
        %v1626 = vadd.f32 %v1624, %v1625
        %v1627 = vsel %vm748, %v1577, 0.0
        %v1628 = vrot.slane %v1627, 4
        %v1629 = vadd.f32 %v1627, %v1628
        %v1630 = vrot.slane %v1629, 2
        %v1631 = vadd.f32 %v1629, %v1630
        %v1632 = vrot.slane %v1631, 1
        %v1633 = vadd.f32 %v1631, %v1632
        %v1634 = vld [vmem:[%s515] sm:$0xff]
        %v1635 = vld [vmem:[%s11] sm:$0xff]
        %v1636 = vld [vmem:[%s11 + $0x8] sm:$0xff]
        %v1637 = vld [vmem:[%s11 + $0x10] sm:$0xff]
        %v1638 = vld [vmem:[%s11 + $0x18] sm:$0xff]
        %v1647 = vsel %vm1313, %v1591, %v1584
        %v1648 = vsel %vm1315, %v1598, %v1647
        %v1649 = vsel %vm1317, %v1605, %v1648
        %v1650 = vsel %vm1319, %v1612, %v1649
        %v1651 = vsel %vm1321, %v1619, %v1650
        %v1652 = vsel %vm1323, %v1626, %v1651
        %v1653 = vsel %vm1325, %v1633, %v1652
        %v1654 = vsel %vm748, %v1653, 0
        %1656 = vmatprep.subr.mxu0 0.0
        %1657 = vmatpush1.msra.mxu0 %v1635
        %1658 = vmatprep.subr.mxu0 0.0
        %1659 = vmatpush1.msra.mxu0 %v1636
        %1660 = vmatprep.subr.mxu0 0.0
        %1661 = vmatpush1.msra.mxu0 %v1637
        %1662 = vmatprep.subr.mxu0 0.0
        %1663 = vmatpush1.msra.mxu0 %v1638
        %1664 = vmatprep.subr.mxu0 0.0
        %1665 = vmatpush1.msra.mxu0 0.0
        %1666 = vmatprep.subr.mxu0 0.0
        %1667 = vmatpush1.msra.mxu0 0.0
        %1668 = vmatprep.subr.mxu0 0.0
        %1669 = vmatpush1.msra.mxu0 0.0
        %1670 = vmatprep.subr.mxu0 0.0
        %1671 = vmatpush1.msra.mxu0 0.0
        %1672 = vmatprep.subr.mxu0 0.0
        %1673 = vmatpush1.msra.mxu0 0.0
        %1674 = vmatprep.subr.mxu0 0.0
        %1675 = vmatpush1.msra.mxu0 0.0
        %1676 = vmatprep.subr.mxu0 0.0
        %1677 = vmatpush1.msra.mxu0 0.0
        %1678 = vmatprep.subr.mxu0 0.0
        %1679 = vmatpush1.msra.mxu0 0.0
        %1680 = vmatprep.subr.mxu0 0.0
        %1681 = vmatpush1.msra.mxu0 0.0
        %1682 = vmatprep.subr.mxu0 0.0
        %1683 = vmatpush1.msra.mxu0 0.0
        %1684 = vmatprep.subr.mxu0 0.0
        %1685 = vmatpush1.msra.mxu0 0.0
        %1686 = vmatprep.subr.mxu0 0.0
        %1687 = vmatpush1.msra.mxu0 0.0
        %1688 = vmatprep.subr.mxu0 0.0
        %1689 = vmatpush1.msra.mxu0 0.0
        %1690 = vmatprep.subr.mxu0 0.0
        %1691 = vmatpush1.msra.mxu0 0.0
        %1692 = vmatprep.subr.mxu0 0.0
        %1693 = vmatpush1.msra.mxu0 0.0
        %1694 = vmatprep.subr.mxu0 0.0
        %1695 = vmatpush1.msra.mxu0 0.0
        %1696 = vmatprep.subr.mxu0 0.0
        %1697 = vmatpush1.msra.mxu0 0.0
        %1698 = vmatprep.subr.mxu0 0.0
        %1699 = vmatpush1.msra.mxu0 0.0
        %1700 = vmatprep.subr.mxu0 0.0
        %1701 = vmatpush1.msra.mxu0 0.0
        %1702 = vmatprep.subr.mxu0 0.0
        %1703 = vmatpush1.msra.mxu0 0.0
        %1704 = vmatprep.subr.mxu0 0.0
        %1705 = vmatpush1.msra.mxu0 0.0
        %1706 = vmatprep.subr.mxu0 0.0
        %1707 = vmatpush1.msra.mxu0 0.0
        %1708 = vmatprep.subr.mxu0 0.0
        %1709 = vmatpush1.msra.mxu0 0.0
        %1710 = vmatprep.subr.mxu0 0.0
        %1711 = vmatpush1.msra.mxu0 0.0
        %1712 = vmatprep.subr.mxu0 0.0
        %1713 = vmatpush1.msra.mxu0 0.0
        %1714 = vmatprep.subr.mxu0 0.0
        %1715 = vmatpush1.msra.mxu0 0.0
        %1716 = vmatprep.subr.mxu0 0.0
        %1717 = vmatpush1.msra.mxu0 0.0
        %1718 = vmatprep.subr.mxu0 0.0
        %1719 = vmatpush1.msra.mxu0 0.0
        %1720 = vmatprep.mubr.f32.mxu0 0.0
        %1721 = vmatmul.mubr.f32.gmra.mrb[0].mxu0 %v1654
        %v1722 = vpop.f32.mrb[0].mxu0
        %v1723 = vadd.f32 0.0, %v1722
        %v1724 = vpop.f32.mrb[0].mxu0
        %1725 = vdwg.mxu0
        %v1726 = vadd.f32 %v1634, %v1723
        %v1727 = vld [vmem:[#allocation16] sm:$0xff]
        %v1728 = vld [vmem:[#allocation16 + $0x8] sm:$0xff]
        %v1729 = vld [vmem:[#allocation16 + $0x10] sm:$0xff]
        %v1730 = vld [vmem:[#allocation16 + $0x18] sm:$0xff]
        %v1731 = vld [vmem:[%s13] sm:$0x1]
        %v1733 = vlaneseq
        %v1734 = vshrl.u32 %v1733, 7
        %v1735 = vsub.s32 0, %v1734
        %v1736 = vrot.slane %v1731, %v1735
        %1738 = vmatprep.subr.mxu0 0.0
        %1739 = vmatpush1.msra.mxu0 %v1727
        %1740 = vmatprep.subr.mxu0 0.0
        %1741 = vmatpush1.msra.mxu0 %v1728
        %1742 = vmatprep.subr.mxu0 0.0
        %1743 = vmatpush1.msra.mxu0 %v1729
        %1744 = vmatprep.subr.mxu0 0.0
        %1745 = vmatpush1.msra.mxu0 %v1730
        %1746 = vmatprep.subr.mxu0 0.0
        %1747 = vmatpush1.msra.mxu0 0.0
        %1748 = vmatprep.subr.mxu0 0.0
        %1749 = vmatpush1.msra.mxu0 0.0
        %1750 = vmatprep.subr.mxu0 0.0
        %1751 = vmatpush1.msra.mxu0 0.0
        %1752 = vmatprep.subr.mxu0 0.0
        %1753 = vmatpush1.msra.mxu0 0.0
        %1754 = vmatprep.subr.mxu0 0.0
        %1755 = vmatpush1.msra.mxu0 0.0
        %1756 = vmatprep.subr.mxu0 0.0
        %1757 = vmatpush1.msra.mxu0 0.0
        %1758 = vmatprep.subr.mxu0 0.0
        %1759 = vmatpush1.msra.mxu0 0.0
        %1760 = vmatprep.subr.mxu0 0.0
        %1761 = vmatpush1.msra.mxu0 0.0
        %1762 = vmatprep.subr.mxu0 0.0
        %1763 = vmatpush1.msra.mxu0 0.0
        %1764 = vmatprep.subr.mxu0 0.0
        %1765 = vmatpush1.msra.mxu0 0.0
        %1766 = vmatprep.subr.mxu0 0.0
        %1767 = vmatpush1.msra.mxu0 0.0
        %1768 = vmatprep.subr.mxu0 0.0
        %1769 = vmatpush1.msra.mxu0 0.0
        %1770 = vmatprep.subr.mxu0 0.0
        %1771 = vmatpush1.msra.mxu0 0.0
        %1772 = vmatprep.subr.mxu0 0.0
        %1773 = vmatpush1.msra.mxu0 0.0
        %1774 = vmatprep.subr.mxu0 0.0
        %1775 = vmatpush1.msra.mxu0 0.0
        %1776 = vmatprep.subr.mxu0 0.0
        %1777 = vmatpush1.msra.mxu0 0.0
        %1778 = vmatprep.subr.mxu0 0.0
        %1779 = vmatpush1.msra.mxu0 0.0
        %1780 = vmatprep.subr.mxu0 0.0
        %1781 = vmatpush1.msra.mxu0 0.0
        %1782 = vmatprep.subr.mxu0 0.0
        %1783 = vmatpush1.msra.mxu0 0.0
        %1784 = vmatprep.subr.mxu0 0.0
        %1785 = vmatpush1.msra.mxu0 0.0
        %1786 = vmatprep.subr.mxu0 0.0
        %1787 = vmatpush1.msra.mxu0 0.0
        %1788 = vmatprep.subr.mxu0 0.0
        %1789 = vmatpush1.msra.mxu0 0.0
        %1790 = vmatprep.subr.mxu0 0.0
        %1791 = vmatpush1.msra.mxu0 0.0
        %1792 = vmatprep.subr.mxu0 0.0
        %1793 = vmatpush1.msra.mxu0 0.0
        %1794 = vmatprep.subr.mxu0 0.0
        %1795 = vmatpush1.msra.mxu0 0.0
        %1796 = vmatprep.subr.mxu0 0.0
        %1797 = vmatpush1.msra.mxu0 0.0
        %1798 = vmatprep.subr.mxu0 0.0
        %1799 = vmatpush1.msra.mxu0 0.0
        %1800 = vmatprep.subr.mxu0 0.0
        %1801 = vmatpush1.msra.mxu0 0.0
        %1802 = vmatprep.mubr.f32.mxu0 0.0
        %1803 = vmatmul.mubr.f32.gmra.mrb[0].mxu0 %v750
        %v1804 = vpop.f32.mrb[0].mxu0
        %v1805 = vadd.f32 %v1736, %v1804
        %v1806 = vpop.f32.mrb[0].mxu0
        %1807 = vdwg.mxu0
        %v1808 = vadd.f32 %v1726, %v1805
        %v1809 = vxor.u32 %v1808, 2147483648
        %v1810 = vmul.f32 %v1809, 1.442695
        %v1811 = vpow.pop %v1810
        %v1812 = vadd.f32 %v1811, 1.0
        %v1813 = vrcp.pop %v1812
        %v1814 = vmul.f32 1.0, %v1813
        %1816 = vrot.lane.b32.xlu0 %v1805, 64
        %v1817 = vpop.permute.xlu0 %1816
        %v1819 = vmul.f32 %v1814, %v1817
        %1821 = vrot.lane.b32.xlu0 %v1819, 64
        %v1822 = vpop.permute.xlu0 %1821
        %v1824 = vadd.f32 %v1726, %v1822
        %v1825 = vtanh.pop %v1824
        %v1826 = vsub.f32 1.0, %v1814
        %1828 = vrot.lane.b32.xlu0 %v1825, 96
        %v1829 = vpop.permute.xlu0 %1828
        %v1831 = vmul.f32 %v1826, %v1829
        %1832 = vrot.lane.b32.xlu0 %v743, 32
        %v1833 = vpop.permute.xlu0 %1832
        %v1835 = vmul.f32 %v1814, %v1833
        %v1836 = vadd.f32 %v1831, %v1835
        %1838 = vrot.lane.b32.xlu0 %v1836, 96
        %v1839 = vpop.permute.xlu0 %1838
        %1841 = vst.msk [vmem:[#allocation2] sm:$0xff] %vm748, %v1839
        %1842 = vst.msk [vmem:[%s579] sm:$0xff] %vm748, %v1839
        %s1843 = sand.u32 %s339, 1
        %s1844 = scalar_lea.sflag [#allocation6], %s1843
        %s1845 = sand.u32 %s339, 1
        %s1846 = smul.addr %s1845, 8
        %s1847 = scalar_lea.vmem [#allocation17], %s1846
        // Predicated region
        $region113: #{tpu_custom_call.1} parent=75 // pred_check
          %p1848 = pneg %p349
        $region114: #{tpu_custom_call.1} parent=75 // pred_check_branch
          %1850 = sbr.rel (%p1848) target = $region116
        $region115: #{tpu_custom_call.1} parent=75 // pred_region
          %s1852 = ssub.s32 128, 128
          %1853 = vsyncadd %s1844, %s1852
          %s1854 = smul.addr %s32, 128
          %s1855 = scalar_lea.hbm %s14, %s1854
          %s1857 = sshll.u32 %s1847, 4
          %s1858 = int_to_ptr.vmem [resolvable:$true] %s1857
          %1860 = dma.vmem_to_hbm [thread:$0]  %s1858, 128, %s1855, %s1844
        $region116: #{tpu_custom_call.1} parent=75 // pred_fallthru
          _
      $region76: #{tpu_custom_call.1} parent=5 // pred_fallthru
        _
      %p1861 = scmp.le.s32.totalorder 2, %s27
      // Predicated region
      $region117: #{tpu_custom_call.1} parent=5 // pred_check
        %p1862 = pneg %p1861
      $region118: #{tpu_custom_call.1} parent=5 // pred_check_branch
        %1864 = sbr.rel (%p1862) target = $region120
      $region119: #{tpu_custom_call.1} parent=5 // pred_region
        %s1865 = ssub.s32 %s27, 2
        // Predicated region
        $region121: #{tpu_custom_call.1} parent=119 // pred_check
          %p1866 = pneg %p355
        $region122: #{tpu_custom_call.1} parent=119 // pred_check_branch
          %1868 = sbr.rel (%p1866) target = $region124
        $region123: #{tpu_custom_call.1} parent=119 // pred_region
          %s1869 = sand.u32 %s340, 1
          %s1870 = scalar_lea.sflag [#allocation6], %s1869
          %s1871 = sand.u32 %s340, 1
          %s1872 = smul.addr %s1871, 8
          %s1873 = scalar_lea.vmem [#allocation17], %s1872
          %1874 = dma.done %s1870, 128
        $region124: #{tpu_custom_call.1} parent=119 // pred_fallthru
          _
      $region120: #{tpu_custom_call.1} parent=5 // pred_fallthru
        _
    $region6: #{tpu_custom_call.1} parent=1 // loop_footer
      %s31 = sadd.s32 1, %s27
    $region7: #{tpu_custom_call.1} parent=1 // loop_footer_branch
      %26 = sbr.rel target = $region3
    $region8: #{tpu_custom_call.1} parent=1 // loop_exit
      _
    %1875 = vsyncpa [#allocation5], 1
    %s1876 = scalar_lea.sflag [#allocation5], 1
    %1877 = vsyncpa %s1876, 1
    %1878 = vsyncpa [#allocation8], 1
    %1879 = vsyncpa [#allocation12], 1
    %1880 = vsyncpa [#allocation15], 1
    %1881 = vsyncpa [#allocation6], 1
    %s1882 = scalar_lea.sflag [#allocation6], 1
    %1883 = vsyncpa %s1882, 1

</llo_original>
